<compile_context>
chip_gen: v6e
topology: v6e:2x2x1
jax: 0.10.0
libtpu: 0.0.40
codegen_flags: <defaults>
</compile_context>

<pallas_src>
import functools

import jax
import jax.numpy as jnp
import numpy as np
from jax.experimental import pallas as pl
from jax.experimental.pallas import tpu as pltpu

LN_EPS = 1e-5   # torch.nn.LayerNorm default
_LANE = 128


def _round_up(x, m):
    return (x + m - 1) // m * m


# ---------------------------------------------------------------------------
# In-kernel helpers (values only; everything stays in vregs/VMEM)
# ---------------------------------------------------------------------------
def _mish(y):
    # mish(y) = y * tanh(softplus(y)) = y * t*(t+2) / (t*(t+2) + 2), t = e^y.
    # Single EUP exp; this rational form avoids the (1+t)^2 - 1 cancellation
    # for strongly negative y.  Guard y>20 to keep t*(t+2) finite.
    t = jnp.exp(jnp.minimum(y, 20.0))
    u = t * (t + 2.0)
    return jnp.where(y > 20.0, y, y * u / (u + 2.0))


def _layer(x, g, b, w, c, *, activation, residual=False, final_tanh=False):
    """y = [x +] Mish( LayerNorm(x)*g + b ) @ w + c  [tanh].  x: [TB, Din] f32."""
    m1 = jnp.mean(x, axis=-1, keepdims=True)
    m2 = jnp.mean(x * x, axis=-1, keepdims=True)
    var = jnp.maximum(m2 - m1 * m1, 0.0)       # one-pass var (XLU reductions unserialized)
    xn = (x - m1) * jax.lax.rsqrt(var + LN_EPS) * g + b
    # Weights are pre-cast at init (bf16 or f32); cast only the activations.
    y = jnp.dot(xn.astype(w.dtype), w, preferred_element_type=jnp.float32) + c
    if activation:
        y = _mish(y)
    if residual:
        y = x + y
    if final_tanh:
        y = jnp.tanh(y)
    return y


# ---------------------------------------------------------------------------
# Fused kernel: whole ResidualActor forward for one batch tile
# ---------------------------------------------------------------------------
def _actor_kernel(*refs, hidden_layers, aligned_concat):
    it = iter(refs)
    obs_ref = next(it)
    xz_ref = next(it)
    ez0 = tuple(next(it) for _ in range(4))
    ez1 = tuple(next(it) for _ in range(4))
    es0 = tuple(next(it) for _ in range(4))
    es1 = tuple(next(it) for _ in range(4))
    res = tuple(next(it) for _ in range(4)) if hidden_layers > 0 else None
    head = tuple(next(it) for _ in range(4))
    proj = None if aligned_concat else (next(it), next(it))
    mu_ref = next(it)

    obs = obs_ref[...].astype(jnp.float32)
    xz = xz_ref[...].astype(jnp.float32)

    def vals(p):
        return tuple(r[...] for r in p)

    # embed_z(cat(obs, z)) -- concat was done once in the wrapper.
    h = _layer(xz, *vals(ez0), activation=True)
    z_emb = _layer(h, *vals(ez1), activation=True)

    # embed_s(obs)
    h = _layer(obs, *vals(es0), activation=True)
    s_emb = _layer(h, *vals(es1), activation=True)

    # emb = cat(s_emb, z_emb)
    if aligned_concat:
        # Both halves are multiples of 128 lanes: pure vreg layout, no shuffle.
        emb = jnp.concatenate([s_emb, z_emb], axis=-1)
    else:
        # Small-model fallback (H/2 not 128-aligned): scatter with precomputed
        # 0/1 projection matrices (resident in VMEM, built once at init).
        p_s, p_z = proj
        emb = (jnp.dot(s_emb, p_s[...], preferred_element_type=jnp.float32)
               + jnp.dot(z_emb, p_z[...], preferred_element_type=jnp.float32))

    # policy trunk: ResidualBlock x hidden_layers -> head Block -> tanh
    h = emb
    for l in range(hidden_layers):
        g = res[0][pl.ds(l, 1), :]
        b = res[1][pl.ds(l, 1), :]
        w = res[2][l]
        c = res[3][pl.ds(l, 1), :]
        h = _layer(h, g, b, w, c, activation=True, residual=True)

    mu = _layer(h, *vals(head), activation=False, final_tanh=True)
    mu_ref[...] = mu.astype(mu_ref.dtype)


# ---------------------------------------------------------------------------
# Parameter init (deterministic; mimics nn.Linear / nn.LayerNorm defaults).
# Builds kernel-ready params: bf16/f32 weights, lane-padded head, [L,H] stacks,
# projection matrices for the non-aligned concat fallback.
# ---------------------------------------------------------------------------
def _init_block(key, din, dout, matmul_dtype):
    k1, k2 = jax.random.split(key)
    bound = 1.0 / np.sqrt(din)
    gamma = jnp.ones((1, din), jnp.float32)
    beta = jnp.zeros((1, din), jnp.float32)
    w = jax.random.uniform(k1, (din, dout), jnp.float32, -bound, bound)
    b = jax.random.uniform(k2, (1, dout), jnp.float32, -bound, bound)
    return (gamma, beta, w.astype(matmul_dtype), b)


def init_residual_actor(key, obs_dim, z_dim, action_dim, hidden_dim,
                        hidden_layers=1, embedding_layers=2,
                        matmul_dtype=jnp.float32):
    # TODO(synk): embedding_layers > 2 adds ResidualBlocks inside the
    # embeddings; only the default (2) is implemented here.
    assert embedding_layers == 2
    H = hidden_dim
    H2 = H // 2
    keys = jax.random.split(key, 5 + max(hidden_layers, 1))
    params = {
        "ez0": _init_block(keys[0], obs_dim + z_dim, H, matmul_dtype),
        "ez1": _init_block(keys[1], H, H2, matmul_dtype),
        "es0": _init_block(keys[2], obs_dim, H, matmul_dtype),
        "es1": _init_block(keys[3], H, H2, matmul_dtype),
    }

    # Head built once with the lane-padded output width.  Padded columns have
    # zero weight and bias -> tanh(0)=0 -> sliced off in the wrapper.
    hg, hb, hw, hc = _init_block(keys[4], H, action_dim, matmul_dtype)
    Ap = _round_up(action_dim, _LANE)
    if Ap != action_dim:
        hw = jnp.pad(hw, ((0, 0), (0, Ap - action_dim)))
        hc = jnp.pad(hc, ((0, 0), (0, Ap - action_dim)))
    params["head"] = (hg, hb, hw, hc)

    if hidden_layers > 0:
        layers = [_init_block(keys[5 + i], H, H, matmul_dtype)
                  for i in range(hidden_layers)]
        # gamma/beta/bias stacked 2-D [L,H]; a [L,1,H] stack would pad the
        # size-1 sublane dim to 8 (8x VMEM for nothing).
        params["res"] = (
            jnp.stack([l[0][0] for l in layers], axis=0),   # gamma [L,H]
            jnp.stack([l[1][0] for l in layers], axis=0),   # beta  [L,H]
            jnp.stack([l[2] for l in layers], axis=0),      # W     [L,H,H]
            jnp.stack([l[3][0] for l in layers], axis=0),   # bias  [L,H]
        )

    # Projection matrices for the non-128-aligned concat fallback (small
    # models only).  Built once; resident in VMEM during the kernel.
    if H2 % _LANE != 0:
        p_s = np.zeros((H2, H), np.float32)
        p_z = np.zeros((H2, H), np.float32)
        p_s[np.arange(H2), np.arange(H2)] = 1.0
        p_z[np.arange(H2), H2 + np.arange(H2)] = 1.0
        params["proj"] = (jnp.asarray(p_s), jnp.asarray(p_z))

    params["_dims"] = dict(obs_dim=obs_dim, z_dim=z_dim, action_dim=action_dim,
                           action_dim_padded=Ap, hidden_dim=H,
                           hidden_layers=hidden_layers)
    return params


# ---------------------------------------------------------------------------
# ResidualActor forward (single fused pallas_call)
# ---------------------------------------------------------------------------
def residual_actor_forward(params, obs, z, std, *, batch_tile=512,
                           interpret=False):
    dims = params["_dims"]
    obs_dim, z_dim = dims["obs_dim"], dims["z_dim"]
    action_dim, Ap = dims["action_dim"], dims["action_dim_padded"]
    H, L = dims["hidden_dim"], dims["hidden_layers"]
    H2 = H // 2
    aligned = (H2 % _LANE == 0)
    B = obs.shape[0]
    assert obs.shape == (B, obs_dim) and z.shape == (B, z_dim)
    d_xz = obs_dim + z_dim

    # obs||z concat once in XLA (trivially cheap); embed_s reads obs directly.
    xz = jnp.concatenate([obs, z], axis=-1)

    # Batch tile: multiple of 8; guarantee >= 2 grid steps when batch allows
    # so dimension_semantics=("parallel",) can shard across v7x's 2 cores.
    Bp8 = _round_up(B, 8)
    TB = _round_up(min(batch_tile, Bp8), 8)
    if Bp8 >= 16:
        TB = min(TB, _round_up((Bp8 + 1) // 2, 8))
    Bp = _round_up(B, TB)
    if Bp != B:
        obs = jnp.pad(obs, ((0, Bp - B), (0, 0)))
        xz = jnp.pad(xz, ((0, Bp - B), (0, 0)))

    args = [obs, xz, *params["ez0"], *params["ez1"], *params["es0"],
            *params["es1"]]
    if L > 0:
        args += list(params["res"])
    args += list(params["head"])
    if not aligned:
        args += list(params["proj"])

    def tile_spec(d):
        return pl.BlockSpec((TB, d), lambda i: (i, 0))

    def resident_spec(a):
        nd = a.ndim
        return pl.BlockSpec(a.shape, lambda i, _nd=nd: (0,) * _nd)

    in_specs = [tile_spec(obs_dim), tile_spec(d_xz)]
    in_specs += [resident_spec(a) for a in args[2:]]
    out_spec = tile_spec(Ap)

    # Advisory cost estimate.
    param_bytes = sum(int(np.prod(a.shape)) * a.dtype.itemsize for a in args[2:])
    flops = 2 * Bp * (d_xz * H + obs_dim * H + 2 * H * H2 + L * H * H + H * Ap)
    if not aligned:
        flops += 2 * Bp * 2 * H2 * H
    transcendentals = Bp * (2 * H + 2 * H2 + L * H + Ap)
    bytes_accessed = int((obs.size + xz.size) * 4 + param_bytes + Bp * Ap * 4)

    # VMEM budget: 2x params (default double-buffering of resident inputs),
    # double-buffered batch-tiled I/O, and live activations.  Cap is
    # generation-aware (128 MiB chips get ~96 MiB, v7x-class gets ~48 MiB).
    io_bytes = 2 * TB * (obs_dim + d_xz + Ap) * 4
    act_bytes = 8 * TB * max(H, d_xz, Ap) * 4
    vmem_need = 2 * param_bytes + io_bytes + act_bytes
    vmem_cap = 64 << 20
    try:
        info = pltpu.get_tpu_info()
        vmem_cap = int(getattr(info, "vmem_capacity_bytes", vmem_cap))
    except Exception:
        pass
    vmem_limit = int(min(max(int(1.5 * vmem_need), 8 << 20),
                         max(vmem_cap * 3 // 4, 32 << 20)))

    kernel = functools.partial(_actor_kernel, hidden_layers=L,
                               aligned_concat=aligned)
    mu_padded = pl.pallas_call(
        kernel,
        out_shape=jax.ShapeDtypeStruct((Bp, Ap), obs.dtype),
        grid=(Bp // TB,),
        in_specs=in_specs,
        out_specs=out_spec,
        compiler_params=pltpu.CompilerParams(
            dimension_semantics=("parallel",),
            vmem_limit_bytes=vmem_limit),
        cost_estimate=pl.CostEstimate(flops=int(flops),
                                      transcendentals=int(transcendentals),
                                      bytes_accessed=bytes_accessed),
        interpret=interpret,
    )(*args)

    mu = mu_padded[:B, :action_dim]
    # TODO(synk): TruncatedNormal sampling is host/distribution logic; return
    # its (loc, scale) parameters instead of a distribution object.
    std_arr = jnp.full_like(mu, std)
    return mu, std_arr


# ---------------------------------------------------------------------------
# Pure-JAX reference (mirrors the PyTorch forward) for correctness check
# ---------------------------------------------------------------------------
def _ref_block(x, g, b, w, c, activation, residual=False, final_tanh=False):
    x = x.astype(jnp.float32)
    mean = x.mean(-1, keepdims=True)
    var = ((x - mean) ** 2).mean(-1, keepdims=True)
    xn = (x - mean) / jnp.sqrt(var + LN_EPS) * g + b
    y = jnp.dot(xn, w.astype(jnp.float32),
                precision=jax.lax.Precision.HIGHEST) + c
    if activation:
        y = y * jnp.tanh(jax.nn.softplus(y))
    if residual:
        y = x + y
    if final_tanh:
        y = jnp.tanh(y)
    return y


def residual_actor_reference(params, obs, z, std):
    dims = params["_dims"]
    x_z = jnp.concatenate([obs, z], axis=-1)
    h = _ref_block(x_z, *params["ez0"], True)
    z_emb = _ref_block(h, *params["ez1"], True)
    h = _ref_block(obs, *params["es0"], True)
    s_emb = _ref_block(h, *params["es1"], True)
    h = jnp.concatenate([s_emb, z_emb], axis=-1)
    if dims["hidden_layers"] > 0:
        rg, rb, rw, rc = params["res"]
        for l in range(dims["hidden_layers"]):
            h = _ref_block(h, rg[l], rb[l], rw[l], rc[l], True, residual=True)
    mu = _ref_block(h, *params["head"], False, final_tanh=True)
    mu = mu[:, :dims["action_dim"]]
    return mu, jnp.full_like(mu, std)


if __name__ == "__main__":
    std = 0.2

    def check(obs_dim, z_dim, action_dim, hidden_dim, hidden_layers, batch,
              matmul_dtype, rtol, atol):
        key = jax.random.PRNGKey(0)
        k_param, k_obs, k_z = jax.random.split(key, 3)
        params = init_residual_actor(k_param, obs_dim, z_dim, action_dim,
                                     hidden_dim, hidden_layers,
                                     matmul_dtype=matmul_dtype)
        obs = jax.random.normal(k_obs, (batch, obs_dim), jnp.float32)
        z = jax.random.normal(k_z, (batch, z_dim), jnp.float32)

        mu, std_arr = residual_actor_forward(params, obs, z, std)
        mu = jax.block_until_ready(mu)
        std_arr = jax.block_until_ready(std_arr)

        mu_ref, std_ref = residual_actor_reference(params, obs, z, std)
        assert mu.shape == (batch, action_dim)
        assert std_arr.shape == (batch, action_dim)
        np.testing.assert_allclose(np.asarray(mu), np.asarray(mu_ref),
                                   rtol=rtol, atol=atol)
        np.testing.assert_allclose(np.asarray(std_arr), np.asarray(std_ref),
                                   rtol=1e-6, atol=1e-6)

    # Small model (H/2 not 128-aligned -> hoisted projection-matrix fallback).
    check(16, 16, 8, 32, 1, 8, jnp.float32, 2e-5, 2e-5)
    # 128-aligned halves -> in-kernel lane concat; >=2 grid steps (megacore).
    check(16, 16, 8, 256, 2, 32, jnp.float32, 5e-5, 5e-5)
    # bf16 matmul operands (weights stored bf16; LN/Mish/tanh stay f32).
    check(16, 16, 8, 256, 2, 32, jnp.bfloat16, 5e-2, 5e-2)

    print("KERNEL_OK")
</pallas_src>

<mosaic_0001>
module attributes {stable_mosaic.version = 11 : i64} {
  func.func @_actor_kernel(%arg0: i32, %arg1: memref<8x16xf32, #tpu.memory_space<vmem>>, %arg2: memref<8x32xf32, #tpu.memory_space<vmem>>, %arg3: memref<1x32xf32, #tpu.memory_space<vmem>>, %arg4: memref<1x32xf32, #tpu.memory_space<vmem>>, %arg5: memref<32x32xf32, #tpu.memory_space<vmem>>, %arg6: memref<1x32xf32, #tpu.memory_space<vmem>>, %arg7: memref<1x32xf32, #tpu.memory_space<vmem>>, %arg8: memref<1x32xf32, #tpu.memory_space<vmem>>, %arg9: memref<32x16xf32, #tpu.memory_space<vmem>>, %arg10: memref<1x16xf32, #tpu.memory_space<vmem>>, %arg11: memref<1x16xf32, #tpu.memory_space<vmem>>, %arg12: memref<1x16xf32, #tpu.memory_space<vmem>>, %arg13: memref<16x32xf32, #tpu.memory_space<vmem>>, %arg14: memref<1x32xf32, #tpu.memory_space<vmem>>, %arg15: memref<1x32xf32, #tpu.memory_space<vmem>>, %arg16: memref<1x32xf32, #tpu.memory_space<vmem>>, %arg17: memref<32x16xf32, #tpu.memory_space<vmem>>, %arg18: memref<1x16xf32, #tpu.memory_space<vmem>>, %arg19: memref<1x32xf32, #tpu.memory_space<vmem>>, %arg20: memref<1x32xf32, #tpu.memory_space<vmem>>, %arg21: memref<1x32x32xf32, #tpu.memory_space<vmem>>, %arg22: memref<1x32xf32, #tpu.memory_space<vmem>>, %arg23: memref<1x32xf32, #tpu.memory_space<vmem>>, %arg24: memref<1x32xf32, #tpu.memory_space<vmem>>, %arg25: memref<32x128xf32, #tpu.memory_space<vmem>>, %arg26: memref<1x128xf32, #tpu.memory_space<vmem>>, %arg27: memref<16x32xf32, #tpu.memory_space<vmem>>, %arg28: memref<16x32xf32, #tpu.memory_space<vmem>>, %arg29: memref<8x128xf32, #tpu.memory_space<vmem>>) attributes {dimension_semantics = [#tpu.dimension_semantics<parallel>], iteration_bounds = array<i64: 1>, scalar_prefetch = 0 : i64, scratch_operands = 0 : i64, tpu.core_type = #tpu.core_type<tc>, window_params = [{transform_indices = @transform_0, window_bounds = array<i64: 8, 16>}, {transform_indices = @transform_1, window_bounds = array<i64: 8, 32>}, {pipeline_mode = #tpu.pipeline_mode<synchronous>, transform_indices = @transform_2, window_bounds = array<i64: 1, 32>}, {pipeline_mode = #tpu.pipeline_mode<synchronous>, transform_indices = @transform_3, window_bounds = array<i64: 1, 32>}, {pipeline_mode = #tpu.pipeline_mode<synchronous>, transform_indices = @transform_4, window_bounds = array<i64: 32, 32>}, {pipeline_mode = #tpu.pipeline_mode<synchronous>, transform_indices = @transform_5, window_bounds = array<i64: 1, 32>}, {pipeline_mode = #tpu.pipeline_mode<synchronous>, transform_indices = @transform_6, window_bounds = array<i64: 1, 32>}, {pipeline_mode = #tpu.pipeline_mode<synchronous>, transform_indices = @transform_7, window_bounds = array<i64: 1, 32>}, {pipeline_mode = #tpu.pipeline_mode<synchronous>, transform_indices = @transform_8, window_bounds = array<i64: 32, 16>}, {pipeline_mode = #tpu.pipeline_mode<synchronous>, transform_indices = @transform_9, window_bounds = array<i64: 1, 16>}, {pipeline_mode = #tpu.pipeline_mode<synchronous>, transform_indices = @transform_10, window_bounds = array<i64: 1, 16>}, {pipeline_mode = #tpu.pipeline_mode<synchronous>, transform_indices = @transform_11, window_bounds = array<i64: 1, 16>}, {pipeline_mode = #tpu.pipeline_mode<synchronous>, transform_indices = @transform_12, window_bounds = array<i64: 16, 32>}, {pipeline_mode = #tpu.pipeline_mode<synchronous>, transform_indices = @transform_13, window_bounds = array<i64: 1, 32>}, {pipeline_mode = #tpu.pipeline_mode<synchronous>, transform_indices = @transform_14, window_bounds = array<i64: 1, 32>}, {pipeline_mode = #tpu.pipeline_mode<synchronous>, transform_indices = @transform_15, window_bounds = array<i64: 1, 32>}, {pipeline_mode = #tpu.pipeline_mode<synchronous>, transform_indices = @transform_16, window_bounds = array<i64: 32, 16>}, {pipeline_mode = #tpu.pipeline_mode<synchronous>, transform_indices = @transform_17, window_bounds = array<i64: 1, 16>}, {pipeline_mode = #tpu.pipeline_mode<synchronous>, transform_indices = @transform_18, window_bounds = array<i64: 1, 32>}, {pipeline_mode = #tpu.pipeline_mode<synchronous>, transform_indices = @transform_19, window_bounds = array<i64: 1, 32>}, {pipeline_mode = #tpu.pipeline_mode<synchronous>, transform_indices = @transform_20, window_bounds = array<i64: 1, 32, 32>}, {pipeline_mode = #tpu.pipeline_mode<synchronous>, transform_indices = @transform_21, window_bounds = array<i64: 1, 32>}, {pipeline_mode = #tpu.pipeline_mode<synchronous>, transform_indices = @transform_22, window_bounds = array<i64: 1, 32>}, {pipeline_mode = #tpu.pipeline_mode<synchronous>, transform_indices = @transform_23, window_bounds = array<i64: 1, 32>}, {pipeline_mode = #tpu.pipeline_mode<synchronous>, transform_indices = @transform_24, window_bounds = array<i64: 32, 128>}, {pipeline_mode = #tpu.pipeline_mode<synchronous>, transform_indices = @transform_25, window_bounds = array<i64: 1, 128>}, {pipeline_mode = #tpu.pipeline_mode<synchronous>, transform_indices = @transform_26, window_bounds = array<i64: 16, 32>}, {pipeline_mode = #tpu.pipeline_mode<synchronous>, transform_indices = @transform_27, window_bounds = array<i64: 16, 32>}, {transform_indices = @transform_28, window_bounds = array<i64: 8, 128>}]} {
    %c0 = arith.constant 0 : index
    %c0_0 = arith.constant 0 : index
    %0 = vector.load %arg1[%c0, %c0_0] : memref<8x16xf32, #tpu.memory_space<vmem>>, vector<8x16xf32>
    %c0_1 = arith.constant 0 : index
    %c0_2 = arith.constant 0 : index
    %1 = vector.load %arg2[%c0_1, %c0_2] : memref<8x32xf32, #tpu.memory_space<vmem>>, vector<8x32xf32>
    %c0_3 = arith.constant 0 : index
    %c0_4 = arith.constant 0 : index
    %2 = vector.load %arg3[%c0_3, %c0_4] : memref<1x32xf32, #tpu.memory_space<vmem>>, vector<1x32xf32>
    %c0_5 = arith.constant 0 : index
    %c0_6 = arith.constant 0 : index
    %3 = vector.load %arg4[%c0_5, %c0_6] : memref<1x32xf32, #tpu.memory_space<vmem>>, vector<1x32xf32>
    %c0_7 = arith.constant 0 : index
    %c0_8 = arith.constant 0 : index
    %4 = vector.load %arg5[%c0_7, %c0_8] : memref<32x32xf32, #tpu.memory_space<vmem>>, vector<32x32xf32>
    %c0_9 = arith.constant 0 : index
    %c0_10 = arith.constant 0 : index
    %5 = vector.load %arg6[%c0_9, %c0_10] : memref<1x32xf32, #tpu.memory_space<vmem>>, vector<1x32xf32>
    %cst = arith.constant dense<0.000000e+00> : vector<8xf32>
    %6 = vector.multi_reduction <add>, %1, %cst [1] : vector<8x32xf32> to vector<8xf32>
    %7 = vector.shape_cast %6 : vector<8xf32> to vector<8x1xf32>
    %cst_11 = arith.constant 3.200000e+01 : f32
    %8 = vector.broadcast %cst_11 : f32 to vector<8x1xf32>
    %9 = arith.divf %7, %8 : vector<8x1xf32>
    %10 = arith.mulf %1, %1 : vector<8x32xf32>
    %cst_12 = arith.constant dense<0.000000e+00> : vector<8xf32>
    %11 = vector.multi_reduction <add>, %10, %cst_12 [1] : vector<8x32xf32> to vector<8xf32>
    %12 = vector.shape_cast %11 : vector<8xf32> to vector<8x1xf32>
    %cst_13 = arith.constant 3.200000e+01 : f32
    %13 = vector.broadcast %cst_13 : f32 to vector<8x1xf32>
    %14 = arith.divf %12, %13 : vector<8x1xf32>
    %15 = arith.mulf %9, %9 : vector<8x1xf32>
    %16 = arith.subf %14, %15 : vector<8x1xf32>
    %cst_14 = arith.constant 0.000000e+00 : f32
    %17 = vector.broadcast %cst_14 : f32 to vector<8x1xf32>
    %18 = arith.maximumf %16, %17 : vector<8x1xf32>
    %19 = vector.broadcast %9 : vector<8x1xf32> to vector<8x32xf32>
    %20 = arith.subf %1, %19 : vector<8x32xf32>
    %cst_15 = arith.constant 9.99999974E-6 : f32
    %21 = vector.broadcast %cst_15 : f32 to vector<8x1xf32>
    %22 = arith.addf %18, %21 : vector<8x1xf32>
    %23 = math.rsqrt %22 : vector<8x1xf32>
    %24 = vector.broadcast %23 : vector<8x1xf32> to vector<8x32xf32>
    %25 = arith.mulf %20, %24 : vector<8x32xf32>
    %26 = vector.broadcast %2 : vector<1x32xf32> to vector<8x32xf32>
    %27 = arith.mulf %25, %26 : vector<8x32xf32>
    %28 = vector.broadcast %3 : vector<1x32xf32> to vector<8x32xf32>
    %29 = arith.addf %27, %28 : vector<8x32xf32>
    %cst_16 = arith.constant dense<0.000000e+00> : vector<8x32xf32>
    %30 = tpu.matmul %29, %4, %cst_16 {dimension_numbers = #tpu.dot_dimension_numbers<[1], [0], [0], [1], [0, 0, 1, 1], [], []>} : vector<8x32xf32>, vector<32x32xf32>, vector<8x32xf32> -> vector<8x32xf32>
    %31 = vector.broadcast %5 : vector<1x32xf32> to vector<8x32xf32>
    %32 = arith.addf %30, %31 : vector<8x32xf32>
    %cst_17 = arith.constant 2.000000e+01 : f32
    %33 = vector.broadcast %cst_17 : f32 to vector<8x32xf32>
    %34 = arith.minimumf %32, %33 : vector<8x32xf32>
    %35 = math.exp %34 : vector<8x32xf32>
    %cst_18 = arith.constant 2.000000e+00 : f32
    %36 = vector.broadcast %cst_18 : f32 to vector<8x32xf32>
    %37 = arith.addf %35, %36 : vector<8x32xf32>
    %38 = arith.mulf %35, %37 : vector<8x32xf32>
    %cst_19 = arith.constant 2.000000e+01 : f32
    %39 = vector.broadcast %cst_19 : f32 to vector<8x32xf32>
    %40 = arith.cmpf ogt, %32, %39 : vector<8x32xf32>
    %41 = arith.mulf %32, %38 : vector<8x32xf32>
    %cst_20 = arith.constant 2.000000e+00 : f32
    %42 = vector.broadcast %cst_20 : f32 to vector<8x32xf32>
    %43 = arith.addf %38, %42 : vector<8x32xf32>
    %44 = arith.divf %41, %43 : vector<8x32xf32>
    %45 = arith.select %40, %32, %44 : vector<8x32xi1>, vector<8x32xf32>
    %c0_21 = arith.constant 0 : index
    %c0_22 = arith.constant 0 : index
    %46 = vector.load %arg7[%c0_21, %c0_22] : memref<1x32xf32, #tpu.memory_space<vmem>>, vector<1x32xf32>
    %c0_23 = arith.constant 0 : index
    %c0_24 = arith.constant 0 : index
    %47 = vector.load %arg8[%c0_23, %c0_24] : memref<1x32xf32, #tpu.memory_space<vmem>>, vector<1x32xf32>
    %c0_25 = arith.constant 0 : index
    %c0_26 = arith.constant 0 : index
    %48 = vector.load %arg9[%c0_25, %c0_26] : memref<32x16xf32, #tpu.memory_space<vmem>>, vector<32x16xf32>
    %c0_27 = arith.constant 0 : index
    %c0_28 = arith.constant 0 : index
    %49 = vector.load %arg10[%c0_27, %c0_28] : memref<1x16xf32, #tpu.memory_space<vmem>>, vector<1x16xf32>
    %cst_29 = arith.constant dense<0.000000e+00> : vector<8xf32>
    %50 = vector.multi_reduction <add>, %45, %cst_29 [1] : vector<8x32xf32> to vector<8xf32>
    %51 = vector.shape_cast %50 : vector<8xf32> to vector<8x1xf32>
    %cst_30 = arith.constant 3.200000e+01 : f32
    %52 = vector.broadcast %cst_30 : f32 to vector<8x1xf32>
    %53 = arith.divf %51, %52 : vector<8x1xf32>
    %54 = arith.mulf %45, %45 : vector<8x32xf32>
    %cst_31 = arith.constant dense<0.000000e+00> : vector<8xf32>
    %55 = vector.multi_reduction <add>, %54, %cst_31 [1] : vector<8x32xf32> to vector<8xf32>
    %56 = vector.shape_cast %55 : vector<8xf32> to vector<8x1xf32>
    %cst_32 = arith.constant 3.200000e+01 : f32
    %57 = vector.broadcast %cst_32 : f32 to vector<8x1xf32>
    %58 = arith.divf %56, %57 : vector<8x1xf32>
    %59 = arith.mulf %53, %53 : vector<8x1xf32>
    %60 = arith.subf %58, %59 : vector<8x1xf32>
    %cst_33 = arith.constant 0.000000e+00 : f32
    %61 = vector.broadcast %cst_33 : f32 to vector<8x1xf32>
    %62 = arith.maximumf %60, %61 : vector<8x1xf32>
    %63 = vector.broadcast %53 : vector<8x1xf32> to vector<8x32xf32>
    %64 = arith.subf %45, %63 : vector<8x32xf32>
    %cst_34 = arith.constant 9.99999974E-6 : f32
    %65 = vector.broadcast %cst_34 : f32 to vector<8x1xf32>
    %66 = arith.addf %62, %65 : vector<8x1xf32>
    %67 = math.rsqrt %66 : vector<8x1xf32>
    %68 = vector.broadcast %67 : vector<8x1xf32> to vector<8x32xf32>
    %69 = arith.mulf %64, %68 : vector<8x32xf32>
    %70 = vector.broadcast %46 : vector<1x32xf32> to vector<8x32xf32>
    %71 = arith.mulf %69, %70 : vector<8x32xf32>
    %72 = vector.broadcast %47 : vector<1x32xf32> to vector<8x32xf32>
    %73 = arith.addf %71, %72 : vector<8x32xf32>
    %cst_35 = arith.constant dense<0.000000e+00> : vector<8x16xf32>
    %74 = tpu.matmul %73, %48, %cst_35 {dimension_numbers = #tpu.dot_dimension_numbers<[1], [0], [0], [1], [0, 0, 1, 1], [], []>} : vector<8x32xf32>, vector<32x16xf32>, vector<8x16xf32> -> vector<8x16xf32>
    %75 = vector.broadcast %49 : vector<1x16xf32> to vector<8x16xf32>
    %76 = arith.addf %74, %75 : vector<8x16xf32>
    %cst_36 = arith.constant 2.000000e+01 : f32
    %77 = vector.broadcast %cst_36 : f32 to vector<8x16xf32>
    %78 = arith.minimumf %76, %77 : vector<8x16xf32>
    %79 = math.exp %78 : vector<8x16xf32>
    %cst_37 = arith.constant 2.000000e+00 : f32
    %80 = vector.broadcast %cst_37 : f32 to vector<8x16xf32>
    %81 = arith.addf %79, %80 : vector<8x16xf32>
    %82 = arith.mulf %79, %81 : vector<8x16xf32>
    %cst_38 = arith.constant 2.000000e+01 : f32
    %83 = vector.broadcast %cst_38 : f32 to vector<8x16xf32>
    %84 = arith.cmpf ogt, %76, %83 : vector<8x16xf32>
    %85 = arith.mulf %76, %82 : vector<8x16xf32>
    %cst_39 = arith.constant 2.000000e+00 : f32
    %86 = vector.broadcast %cst_39 : f32 to vector<8x16xf32>
    %87 = arith.addf %82, %86 : vector<8x16xf32>
    %88 = arith.divf %85, %87 : vector<8x16xf32>
    %89 = arith.select %84, %76, %88 : vector<8x16xi1>, vector<8x16xf32>
    %c0_40 = arith.constant 0 : index
    %c0_41 = arith.constant 0 : index
    %90 = vector.load %arg11[%c0_40, %c0_41] : memref<1x16xf32, #tpu.memory_space<vmem>>, vector<1x16xf32>
    %c0_42 = arith.constant 0 : index
    %c0_43 = arith.constant 0 : index
    %91 = vector.load %arg12[%c0_42, %c0_43] : memref<1x16xf32, #tpu.memory_space<vmem>>, vector<1x16xf32>
    %c0_44 = arith.constant 0 : index
    %c0_45 = arith.constant 0 : index
    %92 = vector.load %arg13[%c0_44, %c0_45] : memref<16x32xf32, #tpu.memory_space<vmem>>, vector<16x32xf32>
    %c0_46 = arith.constant 0 : index
    %c0_47 = arith.constant 0 : index
    %93 = vector.load %arg14[%c0_46, %c0_47] : memref<1x32xf32, #tpu.memory_space<vmem>>, vector<1x32xf32>
    %cst_48 = arith.constant dense<0.000000e+00> : vector<8xf32>
    %94 = vector.multi_reduction <add>, %0, %cst_48 [1] : vector<8x16xf32> to vector<8xf32>
    %95 = vector.shape_cast %94 : vector<8xf32> to vector<8x1xf32>
    %cst_49 = arith.constant 1.600000e+01 : f32
    %96 = vector.broadcast %cst_49 : f32 to vector<8x1xf32>
    %97 = arith.divf %95, %96 : vector<8x1xf32>
    %98 = arith.mulf %0, %0 : vector<8x16xf32>
    %cst_50 = arith.constant dense<0.000000e+00> : vector<8xf32>
    %99 = vector.multi_reduction <add>, %98, %cst_50 [1] : vector<8x16xf32> to vector<8xf32>
    %100 = vector.shape_cast %99 : vector<8xf32> to vector<8x1xf32>
    %cst_51 = arith.constant 1.600000e+01 : f32
    %101 = vector.broadcast %cst_51 : f32 to vector<8x1xf32>
    %102 = arith.divf %100, %101 : vector<8x1xf32>
    %103 = arith.mulf %97, %97 : vector<8x1xf32>
    %104 = arith.subf %102, %103 : vector<8x1xf32>
    %cst_52 = arith.constant 0.000000e+00 : f32
    %105 = vector.broadcast %cst_52 : f32 to vector<8x1xf32>
    %106 = arith.maximumf %104, %105 : vector<8x1xf32>
    %107 = vector.broadcast %97 : vector<8x1xf32> to vector<8x16xf32>
    %108 = arith.subf %0, %107 : vector<8x16xf32>
    %cst_53 = arith.constant 9.99999974E-6 : f32
    %109 = vector.broadcast %cst_53 : f32 to vector<8x1xf32>
    %110 = arith.addf %106, %109 : vector<8x1xf32>
    %111 = math.rsqrt %110 : vector<8x1xf32>
    %112 = vector.broadcast %111 : vector<8x1xf32> to vector<8x16xf32>
    %113 = arith.mulf %108, %112 : vector<8x16xf32>
    %114 = vector.broadcast %90 : vector<1x16xf32> to vector<8x16xf32>
    %115 = arith.mulf %113, %114 : vector<8x16xf32>
    %116 = vector.broadcast %91 : vector<1x16xf32> to vector<8x16xf32>
    %117 = arith.addf %115, %116 : vector<8x16xf32>
    %cst_54 = arith.constant dense<0.000000e+00> : vector<8x32xf32>
    %118 = tpu.matmul %117, %92, %cst_54 {dimension_numbers = #tpu.dot_dimension_numbers<[1], [0], [0], [1], [0, 0, 1, 1], [], []>} : vector<8x16xf32>, vector<16x32xf32>, vector<8x32xf32> -> vector<8x32xf32>
    %119 = vector.broadcast %93 : vector<1x32xf32> to vector<8x32xf32>
    %120 = arith.addf %118, %119 : vector<8x32xf32>
    %cst_55 = arith.constant 2.000000e+01 : f32
    %121 = vector.broadcast %cst_55 : f32 to vector<8x32xf32>
    %122 = arith.minimumf %120, %121 : vector<8x32xf32>
    %123 = math.exp %122 : vector<8x32xf32>
    %cst_56 = arith.constant 2.000000e+00 : f32
    %124 = vector.broadcast %cst_56 : f32 to vector<8x32xf32>
    %125 = arith.addf %123, %124 : vector<8x32xf32>
    %126 = arith.mulf %123, %125 : vector<8x32xf32>
    %cst_57 = arith.constant 2.000000e+01 : f32
    %127 = vector.broadcast %cst_57 : f32 to vector<8x32xf32>
    %128 = arith.cmpf ogt, %120, %127 : vector<8x32xf32>
    %129 = arith.mulf %120, %126 : vector<8x32xf32>
    %cst_58 = arith.constant 2.000000e+00 : f32
    %130 = vector.broadcast %cst_58 : f32 to vector<8x32xf32>
    %131 = arith.addf %126, %130 : vector<8x32xf32>
    %132 = arith.divf %129, %131 : vector<8x32xf32>
    %133 = arith.select %128, %120, %132 : vector<8x32xi1>, vector<8x32xf32>
    %c0_59 = arith.constant 0 : index
    %c0_60 = arith.constant 0 : index
    %134 = vector.load %arg15[%c0_59, %c0_60] : memref<1x32xf32, #tpu.memory_space<vmem>>, vector<1x32xf32>
    %c0_61 = arith.constant 0 : index
    %c0_62 = arith.constant 0 : index
    %135 = vector.load %arg16[%c0_61, %c0_62] : memref<1x32xf32, #tpu.memory_space<vmem>>, vector<1x32xf32>
    %c0_63 = arith.constant 0 : index
    %c0_64 = arith.constant 0 : index
    %136 = vector.load %arg17[%c0_63, %c0_64] : memref<32x16xf32, #tpu.memory_space<vmem>>, vector<32x16xf32>
    %c0_65 = arith.constant 0 : index
    %c0_66 = arith.constant 0 : index
    %137 = vector.load %arg18[%c0_65, %c0_66] : memref<1x16xf32, #tpu.memory_space<vmem>>, vector<1x16xf32>
    %cst_67 = arith.constant dense<0.000000e+00> : vector<8xf32>
    %138 = vector.multi_reduction <add>, %133, %cst_67 [1] : vector<8x32xf32> to vector<8xf32>
    %139 = vector.shape_cast %138 : vector<8xf32> to vector<8x1xf32>
    %cst_68 = arith.constant 3.200000e+01 : f32
    %140 = vector.broadcast %cst_68 : f32 to vector<8x1xf32>
    %141 = arith.divf %139, %140 : vector<8x1xf32>
    %142 = arith.mulf %133, %133 : vector<8x32xf32>
    %cst_69 = arith.constant dense<0.000000e+00> : vector<8xf32>
    %143 = vector.multi_reduction <add>, %142, %cst_69 [1] : vector<8x32xf32> to vector<8xf32>
    %144 = vector.shape_cast %143 : vector<8xf32> to vector<8x1xf32>
    %cst_70 = arith.constant 3.200000e+01 : f32
    %145 = vector.broadcast %cst_70 : f32 to vector<8x1xf32>
    %146 = arith.divf %144, %145 : vector<8x1xf32>
    %147 = arith.mulf %141, %141 : vector<8x1xf32>
    %148 = arith.subf %146, %147 : vector<8x1xf32>
    %cst_71 = arith.constant 0.000000e+00 : f32
    %149 = vector.broadcast %cst_71 : f32 to vector<8x1xf32>
    %150 = arith.maximumf %148, %149 : vector<8x1xf32>
    %151 = vector.broadcast %141 : vector<8x1xf32> to vector<8x32xf32>
    %152 = arith.subf %133, %151 : vector<8x32xf32>
    %cst_72 = arith.constant 9.99999974E-6 : f32
    %153 = vector.broadcast %cst_72 : f32 to vector<8x1xf32>
    %154 = arith.addf %150, %153 : vector<8x1xf32>
    %155 = math.rsqrt %154 : vector<8x1xf32>
    %156 = vector.broadcast %155 : vector<8x1xf32> to vector<8x32xf32>
    %157 = arith.mulf %152, %156 : vector<8x32xf32>
    %158 = vector.broadcast %134 : vector<1x32xf32> to vector<8x32xf32>
    %159 = arith.mulf %157, %158 : vector<8x32xf32>
    %160 = vector.broadcast %135 : vector<1x32xf32> to vector<8x32xf32>
    %161 = arith.addf %159, %160 : vector<8x32xf32>
    %cst_73 = arith.constant dense<0.000000e+00> : vector<8x16xf32>
    %162 = tpu.matmul %161, %136, %cst_73 {dimension_numbers = #tpu.dot_dimension_numbers<[1], [0], [0], [1], [0, 0, 1, 1], [], []>} : vector<8x32xf32>, vector<32x16xf32>, vector<8x16xf32> -> vector<8x16xf32>
    %163 = vector.broadcast %137 : vector<1x16xf32> to vector<8x16xf32>
    %164 = arith.addf %162, %163 : vector<8x16xf32>
    %cst_74 = arith.constant 2.000000e+01 : f32
    %165 = vector.broadcast %cst_74 : f32 to vector<8x16xf32>
    %166 = arith.minimumf %164, %165 : vector<8x16xf32>
    %167 = math.exp %166 : vector<8x16xf32>
    %cst_75 = arith.constant 2.000000e+00 : f32
    %168 = vector.broadcast %cst_75 : f32 to vector<8x16xf32>
    %169 = arith.addf %167, %168 : vector<8x16xf32>
    %170 = arith.mulf %167, %169 : vector<8x16xf32>
    %cst_76 = arith.constant 2.000000e+01 : f32
    %171 = vector.broadcast %cst_76 : f32 to vector<8x16xf32>
    %172 = arith.cmpf ogt, %164, %171 : vector<8x16xf32>
    %173 = arith.mulf %164, %170 : vector<8x16xf32>
    %cst_77 = arith.constant 2.000000e+00 : f32
    %174 = vector.broadcast %cst_77 : f32 to vector<8x16xf32>
    %175 = arith.addf %170, %174 : vector<8x16xf32>
    %176 = arith.divf %173, %175 : vector<8x16xf32>
    %177 = arith.select %172, %164, %176 : vector<8x16xi1>, vector<8x16xf32>
    %c0_78 = arith.constant 0 : index
    %c0_79 = arith.constant 0 : index
    %178 = vector.load %arg27[%c0_78, %c0_79] : memref<16x32xf32, #tpu.memory_space<vmem>>, vector<16x32xf32>
    %cst_80 = arith.constant dense<0.000000e+00> : vector<8x32xf32>
    %179 = tpu.matmul %177, %178, %cst_80 {dimension_numbers = #tpu.dot_dimension_numbers<[1], [0], [0], [1], [0, 0, 1, 1], [], []>} : vector<8x16xf32>, vector<16x32xf32>, vector<8x32xf32> -> vector<8x32xf32>
    %c0_81 = arith.constant 0 : index
    %c0_82 = arith.constant 0 : index
    %180 = vector.load %arg28[%c0_81, %c0_82] : memref<16x32xf32, #tpu.memory_space<vmem>>, vector<16x32xf32>
    %cst_83 = arith.constant dense<0.000000e+00> : vector<8x32xf32>
    %181 = tpu.matmul %89, %180, %cst_83 {dimension_numbers = #tpu.dot_dimension_numbers<[1], [0], [0], [1], [0, 0, 1, 1], [], []>} : vector<8x16xf32>, vector<16x32xf32>, vector<8x32xf32> -> vector<8x32xf32>
    %182 = arith.addf %179, %181 : vector<8x32xf32>
    %c0_84 = arith.constant 0 : index
    %c0_85 = arith.constant 0 : index
    %183 = vector.load %arg19[%c0_84, %c0_85] : memref<1x32xf32, #tpu.memory_space<vmem>>, vector<1x32xf32>
    %c0_86 = arith.constant 0 : index
    %c0_87 = arith.constant 0 : index
    %184 = vector.load %arg20[%c0_86, %c0_87] : memref<1x32xf32, #tpu.memory_space<vmem>>, vector<1x32xf32>
    %c0_88 = arith.constant 0 : index
    %c0_89 = arith.constant 0 : index
    %c0_90 = arith.constant 0 : index
    %185 = vector.load %arg21[%c0_88, %c0_89, %c0_90] : memref<1x32x32xf32, #tpu.memory_space<vmem>>, vector<1x32x32xf32>
    %186 = vector.shape_cast %185 : vector<1x32x32xf32> to vector<32x32xf32>
    %c0_91 = arith.constant 0 : index
    %c0_92 = arith.constant 0 : index
    %187 = vector.load %arg22[%c0_91, %c0_92] : memref<1x32xf32, #tpu.memory_space<vmem>>, vector<1x32xf32>
    %cst_93 = arith.constant dense<0.000000e+00> : vector<8xf32>
    %188 = vector.multi_reduction <add>, %182, %cst_93 [1] : vector<8x32xf32> to vector<8xf32>
    %189 = vector.shape_cast %188 : vector<8xf32> to vector<8x1xf32>
    %cst_94 = arith.constant 3.200000e+01 : f32
    %190 = vector.broadcast %cst_94 : f32 to vector<8x1xf32>
    %191 = arith.divf %189, %190 : vector<8x1xf32>
    %192 = arith.mulf %182, %182 : vector<8x32xf32>
    %cst_95 = arith.constant dense<0.000000e+00> : vector<8xf32>
    %193 = vector.multi_reduction <add>, %192, %cst_95 [1] : vector<8x32xf32> to vector<8xf32>
    %194 = vector.shape_cast %193 : vector<8xf32> to vector<8x1xf32>
    %cst_96 = arith.constant 3.200000e+01 : f32
    %195 = vector.broadcast %cst_96 : f32 to vector<8x1xf32>
    %196 = arith.divf %194, %195 : vector<8x1xf32>
    %197 = arith.mulf %191, %191 : vector<8x1xf32>
    %198 = arith.subf %196, %197 : vector<8x1xf32>
    %cst_97 = arith.constant 0.000000e+00 : f32
    %199 = vector.broadcast %cst_97 : f32 to vector<8x1xf32>
    %200 = arith.maximumf %198, %199 : vector<8x1xf32>
    %201 = vector.broadcast %191 : vector<8x1xf32> to vector<8x32xf32>
    %202 = arith.subf %182, %201 : vector<8x32xf32>
    %cst_98 = arith.constant 9.99999974E-6 : f32
    %203 = vector.broadcast %cst_98 : f32 to vector<8x1xf32>
    %204 = arith.addf %200, %203 : vector<8x1xf32>
    %205 = math.rsqrt %204 : vector<8x1xf32>
    %206 = vector.broadcast %205 : vector<8x1xf32> to vector<8x32xf32>
    %207 = arith.mulf %202, %206 : vector<8x32xf32>
    %208 = vector.broadcast %183 : vector<1x32xf32> to vector<8x32xf32>
    %209 = arith.mulf %207, %208 : vector<8x32xf32>
    %210 = vector.broadcast %184 : vector<1x32xf32> to vector<8x32xf32>
    %211 = arith.addf %209, %210 : vector<8x32xf32>
    %cst_99 = arith.constant dense<0.000000e+00> : vector<8x32xf32>
    %212 = tpu.matmul %211, %186, %cst_99 {dimension_numbers = #tpu.dot_dimension_numbers<[1], [0], [0], [1], [0, 0, 1, 1], [], []>} : vector<8x32xf32>, vector<32x32xf32>, vector<8x32xf32> -> vector<8x32xf32>
    %213 = vector.broadcast %187 : vector<1x32xf32> to vector<8x32xf32>
    %214 = arith.addf %212, %213 : vector<8x32xf32>
    %cst_100 = arith.constant 2.000000e+01 : f32
    %215 = vector.broadcast %cst_100 : f32 to vector<8x32xf32>
    %216 = arith.minimumf %214, %215 : vector<8x32xf32>
    %217 = math.exp %216 : vector<8x32xf32>
    %cst_101 = arith.constant 2.000000e+00 : f32
    %218 = vector.broadcast %cst_101 : f32 to vector<8x32xf32>
    %219 = arith.addf %217, %218 : vector<8x32xf32>
    %220 = arith.mulf %217, %219 : vector<8x32xf32>
    %cst_102 = arith.constant 2.000000e+01 : f32
    %221 = vector.broadcast %cst_102 : f32 to vector<8x32xf32>
    %222 = arith.cmpf ogt, %214, %221 : vector<8x32xf32>
    %223 = arith.mulf %214, %220 : vector<8x32xf32>
    %cst_103 = arith.constant 2.000000e+00 : f32
    %224 = vector.broadcast %cst_103 : f32 to vector<8x32xf32>
    %225 = arith.addf %220, %224 : vector<8x32xf32>
    %226 = arith.divf %223, %225 : vector<8x32xf32>
    %227 = arith.select %222, %214, %226 : vector<8x32xi1>, vector<8x32xf32>
    %228 = arith.addf %182, %227 : vector<8x32xf32>
    %c0_104 = arith.constant 0 : index
    %c0_105 = arith.constant 0 : index
    %229 = vector.load %arg23[%c0_104, %c0_105] : memref<1x32xf32, #tpu.memory_space<vmem>>, vector<1x32xf32>
    %c0_106 = arith.constant 0 : index
    %c0_107 = arith.constant 0 : index
    %230 = vector.load %arg24[%c0_106, %c0_107] : memref<1x32xf32, #tpu.memory_space<vmem>>, vector<1x32xf32>
    %c0_108 = arith.constant 0 : index
    %c0_109 = arith.constant 0 : index
    %231 = vector.load %arg25[%c0_108, %c0_109] : memref<32x128xf32, #tpu.memory_space<vmem>>, vector<32x128xf32>
    %c0_110 = arith.constant 0 : index
    %c0_111 = arith.constant 0 : index
    %232 = vector.load %arg26[%c0_110, %c0_111] : memref<1x128xf32, #tpu.memory_space<vmem>>, vector<1x128xf32>
    %cst_112 = arith.constant dense<0.000000e+00> : vector<8xf32>
    %233 = vector.multi_reduction <add>, %228, %cst_112 [1] : vector<8x32xf32> to vector<8xf32>
    %234 = vector.shape_cast %233 : vector<8xf32> to vector<8x1xf32>
    %cst_113 = arith.constant 3.200000e+01 : f32
    %235 = vector.broadcast %cst_113 : f32 to vector<8x1xf32>
    %236 = arith.divf %234, %235 : vector<8x1xf32>
    %237 = arith.mulf %228, %228 : vector<8x32xf32>
    %cst_114 = arith.constant dense<0.000000e+00> : vector<8xf32>
    %238 = vector.multi_reduction <add>, %237, %cst_114 [1] : vector<8x32xf32> to vector<8xf32>
    %239 = vector.shape_cast %238 : vector<8xf32> to vector<8x1xf32>
    %cst_115 = arith.constant 3.200000e+01 : f32
    %240 = vector.broadcast %cst_115 : f32 to vector<8x1xf32>
    %241 = arith.divf %239, %240 : vector<8x1xf32>
    %242 = arith.mulf %236, %236 : vector<8x1xf32>
    %243 = arith.subf %241, %242 : vector<8x1xf32>
    %cst_116 = arith.constant 0.000000e+00 : f32
    %244 = vector.broadcast %cst_116 : f32 to vector<8x1xf32>
    %245 = arith.maximumf %243, %244 : vector<8x1xf32>
    %246 = vector.broadcast %236 : vector<8x1xf32> to vector<8x32xf32>
    %247 = arith.subf %228, %246 : vector<8x32xf32>
    %cst_117 = arith.constant 9.99999974E-6 : f32
    %248 = vector.broadcast %cst_117 : f32 to vector<8x1xf32>
    %249 = arith.addf %245, %248 : vector<8x1xf32>
    %250 = math.rsqrt %249 : vector<8x1xf32>
    %251 = vector.broadcast %250 : vector<8x1xf32> to vector<8x32xf32>
    %252 = arith.mulf %247, %251 : vector<8x32xf32>
    %253 = vector.broadcast %229 : vector<1x32xf32> to vector<8x32xf32>
    %254 = arith.mulf %252, %253 : vector<8x32xf32>
    %255 = vector.broadcast %230 : vector<1x32xf32> to vector<8x32xf32>
    %256 = arith.addf %254, %255 : vector<8x32xf32>
    %cst_118 = arith.constant dense<0.000000e+00> : vector<8x128xf32>
    %257 = tpu.matmul %256, %231, %cst_118 {dimension_numbers = #tpu.dot_dimension_numbers<[1], [0], [0], [1], [0, 0, 1, 1], [], []>} : vector<8x32xf32>, vector<32x128xf32>, vector<8x128xf32> -> vector<8x128xf32>
    %258 = vector.broadcast %232 : vector<1x128xf32> to vector<8x128xf32>
    %259 = arith.addf %257, %258 : vector<8x128xf32>
    %260 = math.tanh %259 : vector<8x128xf32>
    %c0_119 = arith.constant 0 : index
    %c0_120 = arith.constant 0 : index
    %261 = vector.load %arg29[%c0_119, %c0_120] : memref<8x128xf32, #tpu.memory_space<vmem>>, vector<8x128xf32>
    tpu.vector_store %arg29[%c0_119, %c0_120], %260 {strides = array<i32>} : memref<8x128xf32, #tpu.memory_space<vmem>>, vector<8x128xf32>,
    return
  }
  func.func @transform_0(%arg0: i32) -> (i32, i32) {
    %c0_i32 = arith.constant 0 : i32
    %c0_i32_0 = arith.constant 0 : i32
    return %arg0, %c0_i32 : i32, i32
  }
  func.func @transform_1(%arg0: i32) -> (i32, i32) {
    %c0_i32 = arith.constant 0 : i32
    %c0_i32_0 = arith.constant 0 : i32
    return %arg0, %c0_i32 : i32, i32
  }
  func.func @transform_2(%arg0: i32) -> (i32, i32) {
    %c0_i32 = arith.constant 0 : i32
    %c0_i32_0 = arith.constant 0 : i32
    %c0_i32_1 = arith.constant 0 : i32
    return %c0_i32, %c0_i32_0 : i32, i32
  }
  func.func @transform_3(%arg0: i32) -> (i32, i32) {
    %c0_i32 = arith.constant 0 : i32
    %c0_i32_0 = arith.constant 0 : i32
    %c0_i32_1 = arith.constant 0 : i32
    return %c0_i32, %c0_i32_0 : i32, i32
  }
  func.func @transform_4(%arg0: i32) -> (i32, i32) {
    %c0_i32 = arith.constant 0 : i32
    %c0_i32_0 = arith.constant 0 : i32
    %c0_i32_1 = arith.constant 0 : i32
    return %c0_i32, %c0_i32_0 : i32, i32
  }
  func.func @transform_5(%arg0: i32) -> (i32, i32) {
    %c0_i32 = arith.constant 0 : i32
    %c0_i32_0 = arith.constant 0 : i32
    %c0_i32_1 = arith.constant 0 : i32
    return %c0_i32, %c0_i32_0 : i32, i32
  }
  func.func @transform_6(%arg0: i32) -> (i32, i32) {
    %c0_i32 = arith.constant 0 : i32
    %c0_i32_0 = arith.constant 0 : i32
    %c0_i32_1 = arith.constant 0 : i32
    return %c0_i32, %c0_i32_0 : i32, i32
  }
  func.func @transform_7(%arg0: i32) -> (i32, i32) {
    %c0_i32 = arith.constant 0 : i32
    %c0_i32_0 = arith.constant 0 : i32
    %c0_i32_1 = arith.constant 0 : i32
    return %c0_i32, %c0_i32_0 : i32, i32
  }
  func.func @transform_8(%arg0: i32) -> (i32, i32) {
    %c0_i32 = arith.constant 0 : i32
    %c0_i32_0 = arith.constant 0 : i32
    %c0_i32_1 = arith.constant 0 : i32
    return %c0_i32, %c0_i32_0 : i32, i32
  }
  func.func @transform_9(%arg0: i32) -> (i32, i32) {
    %c0_i32 = arith.constant 0 : i32
    %c0_i32_0 = arith.constant 0 : i32
    %c0_i32_1 = arith.constant 0 : i32
    return %c0_i32, %c0_i32_0 : i32, i32
  }
  func.func @transform_10(%arg0: i32) -> (i32, i32) {
    %c0_i32 = arith.constant 0 : i32
    %c0_i32_0 = arith.constant 0 : i32
    %c0_i32_1 = arith.constant 0 : i32
    return %c0_i32, %c0_i32_0 : i32, i32
  }
  func.func @transform_11(%arg0: i32) -> (i32, i32) {
    %c0_i32 = arith.constant 0 : i32
    %c0_i32_0 = arith.constant 0 : i32
    %c0_i32_1 = arith.constant 0 : i32
    return %c0_i32, %c0_i32_0 : i32, i32
  }
  func.func @transform_12(%arg0: i32) -> (i32, i32) {
    %c0_i32 = arith.constant 0 : i32
    %c0_i32_0 = arith.constant 0 : i32
    %c0_i32_1 = arith.constant 0 : i32
    return %c0_i32, %c0_i32_0 : i32, i32
  }
  func.func @transform_13(%arg0: i32) -> (i32, i32) {
    %c0_i32 = arith.constant 0 : i32
    %c0_i32_0 = arith.constant 0 : i32
    %c0_i32_1 = arith.constant 0 : i32
    return %c0_i32, %c0_i32_0 : i32, i32
  }
  func.func @transform_14(%arg0: i32) -> (i32, i32) {
    %c0_i32 = arith.constant 0 : i32
    %c0_i32_0 = arith.constant 0 : i32
    %c0_i32_1 = arith.constant 0 : i32
    return %c0_i32, %c0_i32_0 : i32, i32
  }
  func.func @transform_15(%arg0: i32) -> (i32, i32) {
    %c0_i32 = arith.constant 0 : i32
    %c0_i32_0 = arith.constant 0 : i32
    %c0_i32_1 = arith.constant 0 : i32
    return %c0_i32, %c0_i32_0 : i32, i32
  }
  func.func @transform_16(%arg0: i32) -> (i32, i32) {
    %c0_i32 = arith.constant 0 : i32
    %c0_i32_0 = arith.constant 0 : i32
    %c0_i32_1 = arith.constant 0 : i32
    return %c0_i32, %c0_i32_0 : i32, i32
  }
  func.func @transform_17(%arg0: i32) -> (i32, i32) {
    %c0_i32 = arith.constant 0 : i32
    %c0_i32_0 = arith.constant 0 : i32
    %c0_i32_1 = arith.constant 0 : i32
    return %c0_i32, %c0_i32_0 : i32, i32
  }
  func.func @transform_18(%arg0: i32) -> (i32, i32) {
    %c0_i32 = arith.constant 0 : i32
    %c0_i32_0 = arith.constant 0 : i32
    %c0_i32_1 = arith.constant 0 : i32
    return %c0_i32, %c0_i32_0 : i32, i32
  }
  func.func @transform_19(%arg0: i32) -> (i32, i32) {
    %c0_i32 = arith.constant 0 : i32
    %c0_i32_0 = arith.constant 0 : i32
    %c0_i32_1 = arith.constant 0 : i32
    return %c0_i32, %c0_i32_0 : i32, i32
  }
  func.func @transform_20(%arg0: i32) -> (i32, i32, i32) {
    %c0_i32 = arith.constant 0 : i32
    %c0_i32_0 = arith.constant 0 : i32
    %c0_i32_1 = arith.constant 0 : i32
    %c0_i32_2 = arith.constant 0 : i32
    return %c0_i32, %c0_i32_0, %c0_i32_1 : i32, i32, i32
  }
  func.func @transform_21(%arg0: i32) -> (i32, i32) {
    %c0_i32 = arith.constant 0 : i32
    %c0_i32_0 = arith.constant 0 : i32
    %c0_i32_1 = arith.constant 0 : i32
    return %c0_i32, %c0_i32_0 : i32, i32
  }
  func.func @transform_22(%arg0: i32) -> (i32, i32) {
    %c0_i32 = arith.constant 0 : i32
    %c0_i32_0 = arith.constant 0 : i32
    %c0_i32_1 = arith.constant 0 : i32
    return %c0_i32, %c0_i32_0 : i32, i32
  }
  func.func @transform_23(%arg0: i32) -> (i32, i32) {
    %c0_i32 = arith.constant 0 : i32
    %c0_i32_0 = arith.constant 0 : i32
    %c0_i32_1 = arith.constant 0 : i32
    return %c0_i32, %c0_i32_0 : i32, i32
  }
  func.func @transform_24(%arg0: i32) -> (i32, i32) {
    %c0_i32 = arith.constant 0 : i32
    %c0_i32_0 = arith.constant 0 : i32
    %c0_i32_1 = arith.constant 0 : i32
    return %c0_i32, %c0_i32_0 : i32, i32
  }
  func.func @transform_25(%arg0: i32) -> (i32, i32) {
    %c0_i32 = arith.constant 0 : i32
    %c0_i32_0 = arith.constant 0 : i32
    %c0_i32_1 = arith.constant 0 : i32
    return %c0_i32, %c0_i32_0 : i32, i32
  }
  func.func @transform_26(%arg0: i32) -> (i32, i32) {
    %c0_i32 = arith.constant 0 : i32
    %c0_i32_0 = arith.constant 0 : i32
    %c0_i32_1 = arith.constant 0 : i32
    return %c0_i32, %c0_i32_0 : i32, i32
  }
  func.func @transform_27(%arg0: i32) -> (i32, i32) {
    %c0_i32 = arith.constant 0 : i32
    %c0_i32_0 = arith.constant 0 : i32
    %c0_i32_1 = arith.constant 0 : i32
    return %c0_i32, %c0_i32_0 : i32, i32
  }
  func.func @transform_28(%arg0: i32) -> (i32, i32) {
    %c0_i32 = arith.constant 0 : i32
    %c0_i32_0 = arith.constant 0 : i32
    return %arg0, %c0_i32 : i32, i32
  }
}

</mosaic_0001>

<llo_original>
// kernel: tpu_custom_call.1
$region0: #{tpu_custom_call.1}
  #allocation0 [shape = 'u32[]', space=smem, size = 0x4, offset = 0x4, fixed_abs, tag = 'smem constant byte address 0x4 - core index']
  #allocation1 [shape = 'u32[144,128]{1,0:T(1,128)}', space=vmem, size = 0x12000, scoped, tag = 'internal scratch']
  %s0 = inlined_call_operand.hbm [shape: f32[8,16], index: 0, kind: input, shape index: {}]
  %s1 = inlined_call_operand.hbm [shape: f32[8,32], index: 1, kind: input, shape index: {}]
  %s2 = inlined_call_operand.hbm [shape: f32[1,32], index: 2, kind: input, shape index: {}]
  %s3 = inlined_call_operand.hbm [shape: f32[1,32], index: 3, kind: input, shape index: {}]
  %s4 = inlined_call_operand.vmem [shape: f32[32,32], index: 4, kind: input, shape index: {}]
  %s5 = inlined_call_operand.hbm [shape: f32[1,32], index: 5, kind: input, shape index: {}]
  %s6 = inlined_call_operand.hbm [shape: f32[1,32], index: 6, kind: input, shape index: {}]
  %s7 = inlined_call_operand.hbm [shape: f32[1,32], index: 7, kind: input, shape index: {}]
  %s8 = inlined_call_operand.vmem [shape: f32[32,16], index: 8, kind: input, shape index: {}]
  %s9 = inlined_call_operand.hbm [shape: f32[1,16], index: 9, kind: input, shape index: {}]
  %s10 = inlined_call_operand.hbm [shape: f32[1,16], index: 10, kind: input, shape index: {}]
  %s11 = inlined_call_operand.hbm [shape: f32[1,16], index: 11, kind: input, shape index: {}]
  %s12 = inlined_call_operand.hbm [shape: f32[16,32], index: 12, kind: input, shape index: {}]
  %s13 = inlined_call_operand.hbm [shape: f32[1,32], index: 13, kind: input, shape index: {}]
  %s14 = inlined_call_operand.hbm [shape: f32[1,32], index: 14, kind: input, shape index: {}]
  %s15 = inlined_call_operand.hbm [shape: f32[1,32], index: 15, kind: input, shape index: {}]
  %s16 = inlined_call_operand.vmem [shape: f32[32,16], index: 16, kind: input, shape index: {}]
  %s17 = inlined_call_operand.hbm [shape: f32[1,16], index: 17, kind: input, shape index: {}]
  %s18 = inlined_call_operand.hbm [shape: f32[1,32], index: 18, kind: input, shape index: {}]
  %s19 = inlined_call_operand.vmem [shape: f32[1,32], index: 19, kind: input, shape index: {}]
  %s20 = inlined_call_operand.vmem [shape: f32[1,32,32], index: 20, kind: input, shape index: {}]
  %s21 = inlined_call_operand.hbm [shape: f32[1,32], index: 21, kind: input, shape index: {}]
  %s22 = inlined_call_operand.hbm [shape: f32[1,32], index: 22, kind: input, shape index: {}]
  %s23 = inlined_call_operand.hbm [shape: f32[1,32], index: 23, kind: input, shape index: {}]
  %s24 = inlined_call_operand.vmem [shape: f32[32,128], index: 24, kind: input, shape index: {}]
  %s25 = inlined_call_operand.hbm [shape: f32[1,128], index: 25, kind: input, shape index: {}]
  %s26 = inlined_call_operand.vmem [shape: f32[16,32], index: 26, kind: input, shape index: {}]
  %s27 = inlined_call_operand.vmem [shape: f32[16,32], index: 27, kind: input, shape index: {}]
  %s28 = inlined_call_operand.hbm [shape: f32[8,128], index: 28, kind: output, shape index: {}]
  %s29 = sld [smem:[#allocation0]]
  $region202: #{tpu_custom_call.1} parent=0
    _
  %s31 = ssub.s32 1, %s29
  %s32 = scalar_select 0, %s31, %s29
  $region1: #{tpu_custom_call.1} parent=0
    #allocation2 [shape = 'u8[4096]{0}', space=vmem, size = 0x1000, scoped, tag = 'input window, operand 0, single buffered']
    #allocation3 [shape = 's32[1]{0}', space=sflag, size = 0x4, scoped, tag = 'scoped memory for tpu_custom_call.1']
    #allocation4 [shape = 's32[1]{0}', space=sflag, size = 0x4, scoped, tag = 'scoped memory for tpu_custom_call.1']
    #allocation5 [shape = 'u8[4096]{0}', space=vmem, size = 0x1000, scoped, tag = 'input window, operand 1, single buffered']
    #allocation6 [shape = 's32[1]{0}', space=sflag, size = 0x4, scoped, tag = 'scoped memory for tpu_custom_call.1']
    #allocation7 [shape = 'u8[512]{0}', space=vmem, size = 0x400, scoped, tag = 'input window, operand 2, single buffered']
    #allocation8 [shape = 'u8[512]{0}', space=vmem, size = 0x400, scoped, tag = 'input window, operand 3, single buffered']
    #allocation9 [shape = 's32[1]{0}', space=sflag, size = 0x4, scoped, tag = 'scoped memory for tpu_custom_call.1']
    #allocation10 [shape = 'u8[512]{0}', space=vmem, size = 0x400, scoped, tag = 'input window, operand 5, single buffered']
    #allocation11 [shape = 'u8[512]{0}', space=vmem, size = 0x400, scoped, tag = 'input window, operand 6, single buffered']
    #allocation12 [shape = 's32[1]{0}', space=sflag, size = 0x4, scoped, tag = 'scoped memory for tpu_custom_call.1']
    #allocation13 [shape = 'u8[512]{0}', space=vmem, size = 0x400, scoped, tag = 'input window, operand 7, single buffered']
    #allocation14 [shape = 'u8[512]{0}', space=vmem, size = 0x400, scoped, tag = 'input window, operand 9, single buffered']
    #allocation15 [shape = 's32[1]{0}', space=sflag, size = 0x4, scoped, tag = 'scoped memory for tpu_custom_call.1']
    #allocation16 [shape = 'u8[512]{0}', space=vmem, size = 0x400, scoped, tag = 'input window, operand 10, single buffered']
    #allocation17 [shape = 'u8[512]{0}', space=vmem, size = 0x400, scoped, tag = 'input window, operand 11, single buffered']
    #allocation18 [shape = 's32[1]{0}', space=sflag, size = 0x4, scoped, tag = 'scoped memory for tpu_custom_call.1']
    #allocation19 [shape = 'u8[8192]{0}', space=vmem, size = 0x2000, scoped, tag = 'input window, operand 12, single buffered']
    #allocation20 [shape = 'u8[512]{0}', space=vmem, size = 0x400, scoped, tag = 'input window, operand 13, single buffered']
    #allocation21 [shape = 's32[1]{0}', space=sflag, size = 0x4, scoped, tag = 'scoped memory for tpu_custom_call.1']
    #allocation22 [shape = 'u8[512]{0}', space=vmem, size = 0x400, scoped, tag = 'input window, operand 14, single buffered']
    #allocation23 [shape = 'u8[512]{0}', space=vmem, size = 0x400, scoped, tag = 'input window, operand 15, single buffered']
    #allocation24 [shape = 's32[1]{0}', space=sflag, size = 0x4, scoped, tag = 'scoped memory for tpu_custom_call.1']
    #allocation25 [shape = 'u8[512]{0}', space=vmem, size = 0x400, scoped, tag = 'input window, operand 17, single buffered']
    #allocation26 [shape = 'u8[512]{0}', space=vmem, size = 0x400, scoped, tag = 'input window, operand 18, single buffered']
    #allocation27 [shape = 's32[1]{0}', space=sflag, size = 0x4, scoped, tag = 'scoped memory for tpu_custom_call.1']
    #allocation28 [shape = 'u8[512]{0}', space=vmem, size = 0x400, scoped, tag = 'input window, operand 21, single buffered']
    #allocation29 [shape = 'u8[512]{0}', space=vmem, size = 0x400, scoped, tag = 'input window, operand 22, single buffered']
    #allocation30 [shape = 's32[1]{0}', space=sflag, size = 0x4, scoped, tag = 'scoped memory for tpu_custom_call.1']
    #allocation31 [shape = 'u8[512]{0}', space=vmem, size = 0x400, scoped, tag = 'input window, operand 23, single buffered']
    #allocation32 [shape = 'u8[512]{0}', space=vmem, size = 0x400, scoped, tag = 'input window, operand 25, single buffered']
    #allocation33 [shape = 's32[1]{0}', space=sflag, size = 0x4, scoped, tag = 'scoped memory for tpu_custom_call.1']
    #allocation34 [shape = 'u8[4096]{0}', space=vmem, size = 0x1000, scoped, tag = 'output window, operand 0, single buffered']
    %33 = vsyncpa [#allocation3], 0
    %34 = vsyncpa [#allocation6], 0
    %35 = vsyncpa [#allocation9], 0
    %36 = vsyncpa [#allocation12], 0
    %37 = vsyncpa [#allocation15], 0
    %38 = vsyncpa [#allocation18], 0
    %39 = vsyncpa [#allocation21], 0
    %40 = vsyncpa [#allocation24], 0
    %41 = vsyncpa [#allocation27], 0
    %42 = vsyncpa [#allocation30], 0
    %43 = vsyncpa [#allocation33], 0
    %44 = vsyncpa [#allocation4], 0
    // Predicated region
    $region2: #{tpu_custom_call.1} parent=1 // pred_check
      _
    $region3: #{tpu_custom_call.1} parent=1 // pred_check_branch
      %46 = sbr.rel (0) target = $region5
    $region4: #{tpu_custom_call.1} parent=1 // pred_region
      %s48 = ssub.s32 128, 128
      %49 = vsyncadd [#allocation3], %s48
      %s51 = sshll.u32 [#allocation2], 4
      %s52 = int_to_ptr.vmem [resolvable:$true] %s51
      %54 = dma.hbm_to_vmem [thread:$0]  %s0, 128, %s52, [#allocation3]
    $region5: #{tpu_custom_call.1} parent=1 // pred_fallthru
      _
    // Predicated region
    $region6: #{tpu_custom_call.1} parent=1 // pred_check
      _
    $region7: #{tpu_custom_call.1} parent=1 // pred_check_branch
      %56 = sbr.rel (0) target = $region9
    $region8: #{tpu_custom_call.1} parent=1 // pred_region
      %s58 = ssub.s32 128, 128
      %59 = vsyncadd [#allocation6], %s58
      %s61 = sshll.u32 [#allocation5], 4
      %s62 = int_to_ptr.vmem [resolvable:$true] %s61
      %64 = dma.hbm_to_vmem [thread:$0]  %s1, 128, %s62, [#allocation6]
    $region9: #{tpu_custom_call.1} parent=1 // pred_fallthru
      _
    // Predicated region
    $region10: #{tpu_custom_call.1} parent=1 // pred_check
      _
    $region11: #{tpu_custom_call.1} parent=1 // pred_check_branch
      %66 = sbr.rel (0) target = $region13
    $region12: #{tpu_custom_call.1} parent=1 // pred_region
      %s68 = ssub.s32 16, 16
      %69 = vsyncadd [#allocation6], %s68
      %s71 = sshll.u32 [#allocation7], 4
      %s72 = int_to_ptr.vmem [resolvable:$true] %s71
      %74 = dma.hbm_to_vmem [thread:$0]  %s2, 16, %s72, [#allocation6]
    $region13: #{tpu_custom_call.1} parent=1 // pred_fallthru
      _
    // Predicated region
    $region14: #{tpu_custom_call.1} parent=1 // pred_check
      _
    $region15: #{tpu_custom_call.1} parent=1 // pred_check_branch
      %76 = sbr.rel (0) target = $region17
    $region16: #{tpu_custom_call.1} parent=1 // pred_region
      %s78 = ssub.s32 16, 16
      %79 = vsyncadd [#allocation9], %s78
      %s81 = sshll.u32 [#allocation8], 4
      %s82 = int_to_ptr.vmem [resolvable:$true] %s81
      %84 = dma.hbm_to_vmem [thread:$0]  %s3, 16, %s82, [#allocation9]
    $region17: #{tpu_custom_call.1} parent=1 // pred_fallthru
      _
    // Predicated region
    $region18: #{tpu_custom_call.1} parent=1 // pred_check
      _
    $region19: #{tpu_custom_call.1} parent=1 // pred_check_branch
      %86 = sbr.rel (0) target = $region21
    $region20: #{tpu_custom_call.1} parent=1 // pred_region
      _
    $region21: #{tpu_custom_call.1} parent=1 // pred_fallthru
      _
    // Predicated region
    $region22: #{tpu_custom_call.1} parent=1 // pred_check
      _
    $region23: #{tpu_custom_call.1} parent=1 // pred_check_branch
      %88 = sbr.rel (0) target = $region25
    $region24: #{tpu_custom_call.1} parent=1 // pred_region
      %s90 = ssub.s32 16, 16
      %91 = vsyncadd [#allocation9], %s90
      %s93 = sshll.u32 [#allocation10], 4
      %s94 = int_to_ptr.vmem [resolvable:$true] %s93
      %96 = dma.hbm_to_vmem [thread:$0]  %s5, 16, %s94, [#allocation9]
    $region25: #{tpu_custom_call.1} parent=1 // pred_fallthru
      _
    // Predicated region
    $region26: #{tpu_custom_call.1} parent=1 // pred_check
      _
    $region27: #{tpu_custom_call.1} parent=1 // pred_check_branch
      %98 = sbr.rel (0) target = $region29
    $region28: #{tpu_custom_call.1} parent=1 // pred_region
      %s100 = ssub.s32 16, 16
      %101 = vsyncadd [#allocation12], %s100
      %s103 = sshll.u32 [#allocation11], 4
      %s104 = int_to_ptr.vmem [resolvable:$true] %s103
      %106 = dma.hbm_to_vmem [thread:$0]  %s6, 16, %s104, [#allocation12]
    $region29: #{tpu_custom_call.1} parent=1 // pred_fallthru
      _
    // Predicated region
    $region30: #{tpu_custom_call.1} parent=1 // pred_check
      _
    $region31: #{tpu_custom_call.1} parent=1 // pred_check_branch
      %108 = sbr.rel (0) target = $region33
    $region32: #{tpu_custom_call.1} parent=1 // pred_region
      %s110 = ssub.s32 16, 16
      %111 = vsyncadd [#allocation12], %s110
      %s113 = sshll.u32 [#allocation13], 4
      %s114 = int_to_ptr.vmem [resolvable:$true] %s113
      %116 = dma.hbm_to_vmem [thread:$0]  %s7, 16, %s114, [#allocation12]
    $region33: #{tpu_custom_call.1} parent=1 // pred_fallthru
      _
    // Predicated region
    $region34: #{tpu_custom_call.1} parent=1 // pred_check
      _
    $region35: #{tpu_custom_call.1} parent=1 // pred_check_branch
      %118 = sbr.rel (0) target = $region37
    $region36: #{tpu_custom_call.1} parent=1 // pred_region
      _
    $region37: #{tpu_custom_call.1} parent=1 // pred_fallthru
      _
    // Predicated region
    $region38: #{tpu_custom_call.1} parent=1 // pred_check
      _
    $region39: #{tpu_custom_call.1} parent=1 // pred_check_branch
      %120 = sbr.rel (0) target = $region41
    $region40: #{tpu_custom_call.1} parent=1 // pred_region
      %s122 = ssub.s32 16, 16
      %123 = vsyncadd [#allocation15], %s122
      %s125 = sshll.u32 [#allocation14], 4
      %s126 = int_to_ptr.vmem [resolvable:$true] %s125
      %128 = dma.hbm_to_vmem [thread:$0]  %s9, 16, %s126, [#allocation15]
    $region41: #{tpu_custom_call.1} parent=1 // pred_fallthru
      _
    // Predicated region
    $region42: #{tpu_custom_call.1} parent=1 // pred_check
      _
    $region43: #{tpu_custom_call.1} parent=1 // pred_check_branch
      %130 = sbr.rel (0) target = $region45
    $region44: #{tpu_custom_call.1} parent=1 // pred_region
      %s132 = ssub.s32 16, 16
      %133 = vsyncadd [#allocation15], %s132
      %s135 = sshll.u32 [#allocation16], 4
      %s136 = int_to_ptr.vmem [resolvable:$true] %s135
      %138 = dma.hbm_to_vmem [thread:$0]  %s10, 16, %s136, [#allocation15]
    $region45: #{tpu_custom_call.1} parent=1 // pred_fallthru
      _
    // Predicated region
    $region46: #{tpu_custom_call.1} parent=1 // pred_check
      _
    $region47: #{tpu_custom_call.1} parent=1 // pred_check_branch
      %140 = sbr.rel (0) target = $region49
    $region48: #{tpu_custom_call.1} parent=1 // pred_region
      %s142 = ssub.s32 16, 16
      %143 = vsyncadd [#allocation18], %s142
      %s145 = sshll.u32 [#allocation17], 4
      %s146 = int_to_ptr.vmem [resolvable:$true] %s145
      %148 = dma.hbm_to_vmem [thread:$0]  %s11, 16, %s146, [#allocation18]
    $region49: #{tpu_custom_call.1} parent=1 // pred_fallthru
      _
    // Predicated region
    $region50: #{tpu_custom_call.1} parent=1 // pred_check
      _
    $region51: #{tpu_custom_call.1} parent=1 // pred_check_branch
      %150 = sbr.rel (0) target = $region53
    $region52: #{tpu_custom_call.1} parent=1 // pred_region
      %s152 = ssub.s32 256, 256
      %153 = vsyncadd [#allocation18], %s152
      %s154 = sshll.u32 [#allocation19], 4
      %s155 = int_to_ptr.vmem [resolvable:$true] %s154
      %160 = dma.hbm_to_vmem [thread:$0]  %s12, 256, %s155, [#allocation18], 128, 128, 8
    $region53: #{tpu_custom_call.1} parent=1 // pred_fallthru
      _
    // Predicated region
    $region54: #{tpu_custom_call.1} parent=1 // pred_check
      _
    $region55: #{tpu_custom_call.1} parent=1 // pred_check_branch
      %162 = sbr.rel (0) target = $region57
    $region56: #{tpu_custom_call.1} parent=1 // pred_region
      %s164 = ssub.s32 16, 16
      %165 = vsyncadd [#allocation21], %s164
      %s167 = sshll.u32 [#allocation20], 4
      %s168 = int_to_ptr.vmem [resolvable:$true] %s167
      %170 = dma.hbm_to_vmem [thread:$0]  %s13, 16, %s168, [#allocation21]
    $region57: #{tpu_custom_call.1} parent=1 // pred_fallthru
      _
    // Predicated region
    $region58: #{tpu_custom_call.1} parent=1 // pred_check
      _
    $region59: #{tpu_custom_call.1} parent=1 // pred_check_branch
      %172 = sbr.rel (0) target = $region61
    $region60: #{tpu_custom_call.1} parent=1 // pred_region
      %s174 = ssub.s32 16, 16
      %175 = vsyncadd [#allocation21], %s174
      %s177 = sshll.u32 [#allocation22], 4
      %s178 = int_to_ptr.vmem [resolvable:$true] %s177
      %180 = dma.hbm_to_vmem [thread:$0]  %s14, 16, %s178, [#allocation21]
    $region61: #{tpu_custom_call.1} parent=1 // pred_fallthru
      _
    // Predicated region
    $region62: #{tpu_custom_call.1} parent=1 // pred_check
      _
    $region63: #{tpu_custom_call.1} parent=1 // pred_check_branch
      %182 = sbr.rel (0) target = $region65
    $region64: #{tpu_custom_call.1} parent=1 // pred_region
      %s184 = ssub.s32 16, 16
      %185 = vsyncadd [#allocation24], %s184
      %s187 = sshll.u32 [#allocation23], 4
      %s188 = int_to_ptr.vmem [resolvable:$true] %s187
      %190 = dma.hbm_to_vmem [thread:$0]  %s15, 16, %s188, [#allocation24]
    $region65: #{tpu_custom_call.1} parent=1 // pred_fallthru
      _
    // Predicated region
    $region66: #{tpu_custom_call.1} parent=1 // pred_check
      _
    $region67: #{tpu_custom_call.1} parent=1 // pred_check_branch
      %192 = sbr.rel (0) target = $region69
    $region68: #{tpu_custom_call.1} parent=1 // pred_region
      _
    $region69: #{tpu_custom_call.1} parent=1 // pred_fallthru
      _
    // Predicated region
    $region70: #{tpu_custom_call.1} parent=1 // pred_check
      _
    $region71: #{tpu_custom_call.1} parent=1 // pred_check_branch
      %194 = sbr.rel (0) target = $region73
    $region72: #{tpu_custom_call.1} parent=1 // pred_region
      %s196 = ssub.s32 16, 16
      %197 = vsyncadd [#allocation24], %s196
      %s199 = sshll.u32 [#allocation25], 4
      %s200 = int_to_ptr.vmem [resolvable:$true] %s199
      %202 = dma.hbm_to_vmem [thread:$0]  %s17, 16, %s200, [#allocation24]
    $region73: #{tpu_custom_call.1} parent=1 // pred_fallthru
      _
    // Predicated region
    $region74: #{tpu_custom_call.1} parent=1 // pred_check
      _
    $region75: #{tpu_custom_call.1} parent=1 // pred_check_branch
      %204 = sbr.rel (0) target = $region77
    $region76: #{tpu_custom_call.1} parent=1 // pred_region
      %s206 = ssub.s32 16, 16
      %207 = vsyncadd [#allocation27], %s206
      %s209 = sshll.u32 [#allocation26], 4
      %s210 = int_to_ptr.vmem [resolvable:$true] %s209
      %212 = dma.hbm_to_vmem [thread:$0]  %s18, 16, %s210, [#allocation27]
    $region77: #{tpu_custom_call.1} parent=1 // pred_fallthru
      _
    // Predicated region
    $region78: #{tpu_custom_call.1} parent=1 // pred_check
      _
    $region79: #{tpu_custom_call.1} parent=1 // pred_check_branch
      %214 = sbr.rel (0) target = $region81
    $region80: #{tpu_custom_call.1} parent=1 // pred_region
      _
    $region81: #{tpu_custom_call.1} parent=1 // pred_fallthru
      _
    // Predicated region
    $region82: #{tpu_custom_call.1} parent=1 // pred_check
      _
    $region83: #{tpu_custom_call.1} parent=1 // pred_check_branch
      %216 = sbr.rel (0) target = $region85
    $region84: #{tpu_custom_call.1} parent=1 // pred_region
      _
    $region85: #{tpu_custom_call.1} parent=1 // pred_fallthru
      _
    // Predicated region
    $region86: #{tpu_custom_call.1} parent=1 // pred_check
      _
    $region87: #{tpu_custom_call.1} parent=1 // pred_check_branch
      %218 = sbr.rel (0) target = $region89
    $region88: #{tpu_custom_call.1} parent=1 // pred_region
      %s220 = ssub.s32 16, 16
      %221 = vsyncadd [#allocation27], %s220
      %s223 = sshll.u32 [#allocation28], 4
      %s224 = int_to_ptr.vmem [resolvable:$true] %s223
      %226 = dma.hbm_to_vmem [thread:$0]  %s21, 16, %s224, [#allocation27]
    $region89: #{tpu_custom_call.1} parent=1 // pred_fallthru
      _
    // Predicated region
    $region90: #{tpu_custom_call.1} parent=1 // pred_check
      _
    $region91: #{tpu_custom_call.1} parent=1 // pred_check_branch
      %228 = sbr.rel (0) target = $region93
    $region92: #{tpu_custom_call.1} parent=1 // pred_region
      %s230 = ssub.s32 16, 16
      %231 = vsyncadd [#allocation30], %s230
      %s233 = sshll.u32 [#allocation29], 4
      %s234 = int_to_ptr.vmem [resolvable:$true] %s233
      %236 = dma.hbm_to_vmem [thread:$0]  %s22, 16, %s234, [#allocation30]
    $region93: #{tpu_custom_call.1} parent=1 // pred_fallthru
      _
    // Predicated region
    $region94: #{tpu_custom_call.1} parent=1 // pred_check
      _
    $region95: #{tpu_custom_call.1} parent=1 // pred_check_branch
      %238 = sbr.rel (0) target = $region97
    $region96: #{tpu_custom_call.1} parent=1 // pred_region
      %s240 = ssub.s32 16, 16
      %241 = vsyncadd [#allocation30], %s240
      %s243 = sshll.u32 [#allocation31], 4
      %s244 = int_to_ptr.vmem [resolvable:$true] %s243
      %246 = dma.hbm_to_vmem [thread:$0]  %s23, 16, %s244, [#allocation30]
    $region97: #{tpu_custom_call.1} parent=1 // pred_fallthru
      _
    // Predicated region
    $region98: #{tpu_custom_call.1} parent=1 // pred_check
      _
    $region99: #{tpu_custom_call.1} parent=1 // pred_check_branch
      %248 = sbr.rel (0) target = $region101
    $region100: #{tpu_custom_call.1} parent=1 // pred_region
      _
    $region101: #{tpu_custom_call.1} parent=1 // pred_fallthru
      _
    // Predicated region
    $region102: #{tpu_custom_call.1} parent=1 // pred_check
      _
    $region103: #{tpu_custom_call.1} parent=1 // pred_check_branch
      %250 = sbr.rel (0) target = $region105
    $region104: #{tpu_custom_call.1} parent=1 // pred_region
      %s252 = ssub.s32 16, 16
      %253 = vsyncadd [#allocation33], %s252
      %s255 = sshll.u32 [#allocation32], 4
      %s256 = int_to_ptr.vmem [resolvable:$true] %s255
      %258 = dma.hbm_to_vmem [thread:$0]  %s25, 16, %s256, [#allocation33]
    $region105: #{tpu_custom_call.1} parent=1 // pred_fallthru
      _
    // Predicated region
    $region106: #{tpu_custom_call.1} parent=1 // pred_check
      _
    $region107: #{tpu_custom_call.1} parent=1 // pred_check_branch
      %260 = sbr.rel (0) target = $region109
    $region108: #{tpu_custom_call.1} parent=1 // pred_region
      _
    $region109: #{tpu_custom_call.1} parent=1 // pred_fallthru
      _
    // Predicated region
    $region110: #{tpu_custom_call.1} parent=1 // pred_check
      _
    $region111: #{tpu_custom_call.1} parent=1 // pred_check_branch
      %262 = sbr.rel (0) target = $region113
    $region112: #{tpu_custom_call.1} parent=1 // pred_region
      _
    $region113: #{tpu_custom_call.1} parent=1 // pred_fallthru
      _
    // Predicated region
    $region114: #{tpu_custom_call.1} parent=1 // pred_check
      _
    $region115: #{tpu_custom_call.1} parent=1 // pred_check_branch
      %264 = sbr.rel (0) target = $region117
    $region116: #{tpu_custom_call.1} parent=1 // pred_region
      %265 = dma.done [#allocation3], 128
    $region117: #{tpu_custom_call.1} parent=1 // pred_fallthru
      _
    // Predicated region
    $region118: #{tpu_custom_call.1} parent=1 // pred_check
      _
    $region119: #{tpu_custom_call.1} parent=1 // pred_check_branch
      %267 = sbr.rel (0) target = $region121
    $region120: #{tpu_custom_call.1} parent=1 // pred_region
      %268 = dma.done [#allocation6], 128
    $region121: #{tpu_custom_call.1} parent=1 // pred_fallthru
      _
    // Predicated region
    $region122: #{tpu_custom_call.1} parent=1 // pred_check
      _
    $region123: #{tpu_custom_call.1} parent=1 // pred_check_branch
      %270 = sbr.rel (0) target = $region125
    $region124: #{tpu_custom_call.1} parent=1 // pred_region
      %271 = dma.done [#allocation6], 16
    $region125: #{tpu_custom_call.1} parent=1 // pred_fallthru
      _
    // Predicated region
    $region126: #{tpu_custom_call.1} parent=1 // pred_check
      _
    $region127: #{tpu_custom_call.1} parent=1 // pred_check_branch
      %273 = sbr.rel (0) target = $region129
    $region128: #{tpu_custom_call.1} parent=1 // pred_region
      %274 = dma.done [#allocation9], 16
    $region129: #{tpu_custom_call.1} parent=1 // pred_fallthru
      _
    // Predicated region
    $region130: #{tpu_custom_call.1} parent=1 // pred_check
      _
    $region131: #{tpu_custom_call.1} parent=1 // pred_check_branch
      %276 = sbr.rel (0) target = $region133
    $region132: #{tpu_custom_call.1} parent=1 // pred_region
      %277 = dma.done [#allocation9], 16
    $region133: #{tpu_custom_call.1} parent=1 // pred_fallthru
      _
    // Predicated region
    $region134: #{tpu_custom_call.1} parent=1 // pred_check
      _
    $region135: #{tpu_custom_call.1} parent=1 // pred_check_branch
      %279 = sbr.rel (0) target = $region137
    $region136: #{tpu_custom_call.1} parent=1 // pred_region
      %280 = dma.done [#allocation12], 16
    $region137: #{tpu_custom_call.1} parent=1 // pred_fallthru
      _
    // Predicated region
    $region138: #{tpu_custom_call.1} parent=1 // pred_check
      _
    $region139: #{tpu_custom_call.1} parent=1 // pred_check_branch
      %282 = sbr.rel (0) target = $region141
    $region140: #{tpu_custom_call.1} parent=1 // pred_region
      %283 = dma.done [#allocation12], 16
    $region141: #{tpu_custom_call.1} parent=1 // pred_fallthru
      _
    // Predicated region
    $region142: #{tpu_custom_call.1} parent=1 // pred_check
      _
    $region143: #{tpu_custom_call.1} parent=1 // pred_check_branch
      %285 = sbr.rel (0) target = $region145
    $region144: #{tpu_custom_call.1} parent=1 // pred_region
      %286 = dma.done [#allocation15], 16
    $region145: #{tpu_custom_call.1} parent=1 // pred_fallthru
      _
    // Predicated region
    $region146: #{tpu_custom_call.1} parent=1 // pred_check
      _
    $region147: #{tpu_custom_call.1} parent=1 // pred_check_branch
      %288 = sbr.rel (0) target = $region149
    $region148: #{tpu_custom_call.1} parent=1 // pred_region
      %289 = dma.done [#allocation15], 16
    $region149: #{tpu_custom_call.1} parent=1 // pred_fallthru
      _
    // Predicated region
    $region150: #{tpu_custom_call.1} parent=1 // pred_check
      _
    $region151: #{tpu_custom_call.1} parent=1 // pred_check_branch
      %291 = sbr.rel (0) target = $region153
    $region152: #{tpu_custom_call.1} parent=1 // pred_region
      %292 = dma.done [#allocation18], 16
    $region153: #{tpu_custom_call.1} parent=1 // pred_fallthru
      _
    // Predicated region
    $region154: #{tpu_custom_call.1} parent=1 // pred_check
      _
    $region155: #{tpu_custom_call.1} parent=1 // pred_check_branch
      %294 = sbr.rel (0) target = $region157
    $region156: #{tpu_custom_call.1} parent=1 // pred_region
      %295 = dma.done [#allocation18], 256
    $region157: #{tpu_custom_call.1} parent=1 // pred_fallthru
      _
    // Predicated region
    $region158: #{tpu_custom_call.1} parent=1 // pred_check
      _
    $region159: #{tpu_custom_call.1} parent=1 // pred_check_branch
      %297 = sbr.rel (0) target = $region161
    $region160: #{tpu_custom_call.1} parent=1 // pred_region
      %298 = dma.done [#allocation21], 16
    $region161: #{tpu_custom_call.1} parent=1 // pred_fallthru
      _
    // Predicated region
    $region162: #{tpu_custom_call.1} parent=1 // pred_check
      _
    $region163: #{tpu_custom_call.1} parent=1 // pred_check_branch
      %300 = sbr.rel (0) target = $region165
    $region164: #{tpu_custom_call.1} parent=1 // pred_region
      %301 = dma.done [#allocation21], 16
    $region165: #{tpu_custom_call.1} parent=1 // pred_fallthru
      _
    // Predicated region
    $region166: #{tpu_custom_call.1} parent=1 // pred_check
      _
    $region167: #{tpu_custom_call.1} parent=1 // pred_check_branch
      %303 = sbr.rel (0) target = $region169
    $region168: #{tpu_custom_call.1} parent=1 // pred_region
      %304 = dma.done [#allocation24], 16
    $region169: #{tpu_custom_call.1} parent=1 // pred_fallthru
      _
    // Predicated region
    $region170: #{tpu_custom_call.1} parent=1 // pred_check
      _
    $region171: #{tpu_custom_call.1} parent=1 // pred_check_branch
      %306 = sbr.rel (0) target = $region173
    $region172: #{tpu_custom_call.1} parent=1 // pred_region
      %307 = dma.done [#allocation24], 16
    $region173: #{tpu_custom_call.1} parent=1 // pred_fallthru
      _
    // Predicated region
    $region174: #{tpu_custom_call.1} parent=1 // pred_check
      _
    $region175: #{tpu_custom_call.1} parent=1 // pred_check_branch
      %309 = sbr.rel (0) target = $region177
    $region176: #{tpu_custom_call.1} parent=1 // pred_region
      %310 = dma.done [#allocation27], 16
    $region177: #{tpu_custom_call.1} parent=1 // pred_fallthru
      _
    // Predicated region
    $region178: #{tpu_custom_call.1} parent=1 // pred_check
      _
    $region179: #{tpu_custom_call.1} parent=1 // pred_check_branch
      %312 = sbr.rel (0) target = $region181
    $region180: #{tpu_custom_call.1} parent=1 // pred_region
      %313 = dma.done [#allocation27], 16
    $region181: #{tpu_custom_call.1} parent=1 // pred_fallthru
      _
    // Predicated region
    $region182: #{tpu_custom_call.1} parent=1 // pred_check
      _
    $region183: #{tpu_custom_call.1} parent=1 // pred_check_branch
      %315 = sbr.rel (0) target = $region185
    $region184: #{tpu_custom_call.1} parent=1 // pred_region
      %316 = dma.done [#allocation30], 16
    $region185: #{tpu_custom_call.1} parent=1 // pred_fallthru
      _
    // Predicated region
    $region186: #{tpu_custom_call.1} parent=1 // pred_check
      _
    $region187: #{tpu_custom_call.1} parent=1 // pred_check_branch
      %318 = sbr.rel (0) target = $region189
    $region188: #{tpu_custom_call.1} parent=1 // pred_region
      %319 = dma.done [#allocation30], 16
    $region189: #{tpu_custom_call.1} parent=1 // pred_fallthru
      _
    // Predicated region
    $region190: #{tpu_custom_call.1} parent=1 // pred_check
      _
    $region191: #{tpu_custom_call.1} parent=1 // pred_check_branch
      %321 = sbr.rel (0) target = $region193
    $region192: #{tpu_custom_call.1} parent=1 // pred_region
      %322 = dma.done [#allocation33], 16
    $region193: #{tpu_custom_call.1} parent=1 // pred_fallthru
      _
    %v323 = vld [vmem:[#allocation2] sm:$0xff]
    %v324 = vld [vmem:[#allocation5] sm:$0xff]
    %v325 = vld [vmem:[#allocation7] sm:$0x1]
    %v326 = vld [vmem:[#allocation8] sm:$0x1]
    %v327 = vld [vmem:[%s4] sm:$0xff]
    %v328 = vld [vmem:[%s4 + $0x8] sm:$0xff]
    %v329 = vld [vmem:[%s4 + $0x10] sm:$0xff]
    %v330 = vld [vmem:[%s4 + $0x18] sm:$0xff]
    %v331 = vld [vmem:[#allocation10] sm:$0x1]
    %vm332 = vcmask 261120
    %v333 = vsel %vm332, %v324, 0.0
    %334 = vadd.xlane.f32.xlu0 %v333
    %v335 = vpop.xlane.xlu0 %334
    %v336 = vrcp.pop 32.0
    %v337 = vmul.f32 %v335, %v336
    %v338 = vmul.f32 %v324, %v324
    %v339 = vsel %vm332, %v338, 0.0
    %340 = vadd.xlane.f32.xlu0 %v339
    %v341 = vpop.xlane.xlu0 %340
    %v342 = vmul.f32 %v341, %v336
    %v343 = vmul.f32 %v337, %v337
    %v344 = vsub.f32 %v342, %v343
    %v345 = vmax.f32 %v344, 0.0
    %v346 = vsub.f32 %v324, %v337
    %v347 = vadd.f32 %v345, 1e-05
    %v348 = vrsqrt.pop %v347
    %v349 = vmul.f32 %v346, %v348
    %v351 = vlaneseq
    %v352 = vshrl.u32 %v351, 7
    %v353 = vsub.s32 0, %v352
    %v354 = vrot.slane %v325, %v353
    %v356 = vmul.f32 %v349, %v354
    %v358 = vlaneseq
    %v359 = vshrl.u32 %v358, 7
    %v360 = vsub.s32 0, %v359
    %v361 = vrot.slane %v326, %v360
    %v363 = vadd.f32 %v356, %v361
    %v365 = vlaneseq
    %v366 = vshrl.u32 %v365, 7
    %v367 = vsub.s32 0, %v366
    %v368 = vrot.slane %v331, %v367
    %v371 = vsel %vm332, %v363, 0
    %373 = vmatprep.subr.mxu0 0.0
    %374 = vmatpush1.msra.mxu0 0.0
    %375 = vmatprep.subr.mxu0 0.0
    %376 = vmatpush1.msra.mxu0 0.0
    %377 = vmatprep.subr.mxu0 0.0
    %378 = vmatpush1.msra.mxu0 0.0
    %379 = vmatprep.subr.mxu0 0.0
    %380 = vmatpush1.msra.mxu0 0.0
    %381 = vmatprep.subr.mxu0 0.0
    %382 = vmatpush1.msra.mxu0 0.0
    %383 = vmatprep.subr.mxu0 0.0
    %384 = vmatpush1.msra.mxu0 0.0
    %385 = vmatprep.subr.mxu0 0.0
    %386 = vmatpush1.msra.mxu0 0.0
    %387 = vmatprep.subr.mxu0 0.0
    %388 = vmatpush1.msra.mxu0 0.0
    %389 = vmatprep.subr.mxu0 0.0
    %390 = vmatpush1.msra.mxu0 0.0
    %391 = vmatprep.subr.mxu0 0.0
    %392 = vmatpush1.msra.mxu0 0.0
    %393 = vmatprep.subr.mxu0 0.0
    %394 = vmatpush1.msra.mxu0 0.0
    %395 = vmatprep.subr.mxu0 0.0
    %396 = vmatpush1.msra.mxu0 0.0
    %397 = vmatprep.subr.mxu0 0.0
    %398 = vmatpush1.msra.mxu0 %v330
    %399 = vmatprep.subr.mxu0 0.0
    %400 = vmatpush1.msra.mxu0 %v329
    %401 = vmatprep.subr.mxu0 0.0
    %402 = vmatpush1.msra.mxu0 %v328
    %403 = vmatprep.subr.mxu0 0.0
    %404 = vmatpush1.msra.mxu0 %v327
    %405 = vmatprep.subr.mxu0 0.0
    %406 = vmatpush2.msra.mxu0 0.0
    %407 = vmatprep.subr.mxu0 0.0
    %408 = vmatpush2.msra.mxu0 0.0
    %409 = vmatprep.subr.mxu0 0.0
    %410 = vmatpush2.msra.mxu0 0.0
    %411 = vmatprep.subr.mxu0 0.0
    %412 = vmatpush2.msra.mxu0 0.0
    %413 = vmatprep.subr.mxu0 0.0
    %414 = vmatpush2.msra.mxu0 0.0
    %415 = vmatprep.subr.mxu0 0.0
    %416 = vmatpush2.msra.mxu0 0.0
    %417 = vmatprep.subr.mxu0 0.0
    %418 = vmatpush2.msra.mxu0 0.0
    %419 = vmatprep.subr.mxu0 0.0
    %420 = vmatpush2.msra.mxu0 0.0
    %421 = vmatprep.subr.mxu0 0.0
    %422 = vmatpush2.msra.mxu0 0.0
    %423 = vmatprep.subr.mxu0 0.0
    %424 = vmatpush2.msra.mxu0 0.0
    %425 = vmatprep.subr.mxu0 0.0
    %426 = vmatpush2.msra.mxu0 0.0
    %427 = vmatprep.subr.mxu0 0.0
    %428 = vmatpush2.msra.mxu0 0.0
    %429 = vmatprep.subr.mxu0 0.0
    %430 = vmatpush2.msra.mxu0 0.0
    %431 = vmatprep.subr.mxu0 0.0
    %432 = vmatpush2.msra.mxu0 0.0
    %433 = vmatprep.subr.mxu0 0.0
    %434 = vmatpush2.msra.mxu0 0.0
    %435 = vmatprep.subr.mxu0 0.0
    %436 = vmatpush2.msra.mxu0 0.0
    %437 = vmatprep.mubr.f32.mxu0 0.0
    %438 = vmatmul.mubr.f32.gmra.mxu0 %v371
    %v439 = vpop.f32.mrf.mxu0
    %v440 = vadd.f32 %v368, %v439
    %v441 = vpop.f32.mrf.mxu0
    %442 = vdwg.mxu0
    %v443 = vmin.f32 %v440, 20.0
    %v444 = vmul.f32 %v443, 1.442695
    %v445 = vpow.pop %v444
    %v446 = vadd.f32 %v445, 2.0
    %v447 = vmul.f32 %v445, %v446
    %vm448 = vcmp.gt.f32.partialorder %v440, 20.0
    %v449 = vmul.f32 %v440, %v447
    %v450 = vadd.f32 %v447, 2.0
    %v451 = vrcp.pop %v450
    %v452 = vmul.f32 %v449, %v451
    %v453 = vsel %vm448, %v440, %v452
    %v454 = vld [vmem:[#allocation11] sm:$0x1]
    %v455 = vld [vmem:[#allocation13] sm:$0x1]
    %v456 = vld [vmem:[%s8] sm:$0xff]
    %v457 = vld [vmem:[%s8 + $0x8] sm:$0xff]
    %v458 = vld [vmem:[%s8 + $0x10] sm:$0xff]
    %v459 = vld [vmem:[%s8 + $0x18] sm:$0xff]
    %v460 = vld [vmem:[#allocation14] sm:$0x1]
    %v461 = vsel %vm332, %v453, 0.0
    %462 = vadd.xlane.f32.xlu0 %v461
    %v463 = vpop.xlane.xlu0 %462
    %v464 = vmul.f32 %v463, %v336
    %v465 = vmul.f32 %v453, %v453
    %v466 = vsel %vm332, %v465, 0.0
    %467 = vadd.xlane.f32.xlu0 %v466
    %v468 = vpop.xlane.xlu0 %467
    %v469 = vmul.f32 %v468, %v336
    %v470 = vmul.f32 %v464, %v464
    %v471 = vsub.f32 %v469, %v470
    %v472 = vmax.f32 %v471, 0.0
    %v473 = vsub.f32 %v453, %v464
    %v474 = vadd.f32 %v472, 1e-05
    %v475 = vrsqrt.pop %v474
    %v476 = vmul.f32 %v473, %v475
    %v478 = vlaneseq
    %v479 = vshrl.u32 %v478, 7
    %v480 = vsub.s32 0, %v479
    %v481 = vrot.slane %v454, %v480
    %v483 = vmul.f32 %v476, %v481
    %v485 = vlaneseq
    %v486 = vshrl.u32 %v485, 7
    %v487 = vsub.s32 0, %v486
    %v488 = vrot.slane %v455, %v487
    %v490 = vadd.f32 %v483, %v488
    %v492 = vlaneseq
    %v493 = vshrl.u32 %v492, 7
    %v494 = vsub.s32 0, %v493
    %v495 = vrot.slane %v460, %v494
    %v498 = vsel %vm332, %v490, 0
    %500 = vmatprep.subr.mxu0 0.0
    %501 = vmatpush1.msra.mxu0 0.0
    %502 = vmatprep.subr.mxu0 0.0
    %503 = vmatpush1.msra.mxu0 0.0
    %504 = vmatprep.subr.mxu0 0.0
    %505 = vmatpush1.msra.mxu0 0.0
    %506 = vmatprep.subr.mxu0 0.0
    %507 = vmatpush1.msra.mxu0 0.0
    %508 = vmatprep.subr.mxu0 0.0
    %509 = vmatpush1.msra.mxu0 0.0
    %510 = vmatprep.subr.mxu0 0.0
    %511 = vmatpush1.msra.mxu0 0.0
    %512 = vmatprep.subr.mxu0 0.0
    %513 = vmatpush1.msra.mxu0 0.0
    %514 = vmatprep.subr.mxu0 0.0
    %515 = vmatpush1.msra.mxu0 0.0
    %516 = vmatprep.subr.mxu0 0.0
    %517 = vmatpush1.msra.mxu0 0.0
    %518 = vmatprep.subr.mxu0 0.0
    %519 = vmatpush1.msra.mxu0 0.0
    %520 = vmatprep.subr.mxu0 0.0
    %521 = vmatpush1.msra.mxu0 0.0
    %522 = vmatprep.subr.mxu0 0.0
    %523 = vmatpush1.msra.mxu0 0.0
    %524 = vmatprep.subr.mxu0 0.0
    %525 = vmatpush1.msra.mxu0 %v459
    %526 = vmatprep.subr.mxu0 0.0
    %527 = vmatpush1.msra.mxu0 %v458
    %528 = vmatprep.subr.mxu0 0.0
    %529 = vmatpush1.msra.mxu0 %v457
    %530 = vmatprep.subr.mxu0 0.0
    %531 = vmatpush1.msra.mxu0 %v456
    %532 = vmatprep.subr.mxu0 0.0
    %533 = vmatpush2.msra.mxu0 0.0
    %534 = vmatprep.subr.mxu0 0.0
    %535 = vmatpush2.msra.mxu0 0.0
    %536 = vmatprep.subr.mxu0 0.0
    %537 = vmatpush2.msra.mxu0 0.0
    %538 = vmatprep.subr.mxu0 0.0
    %539 = vmatpush2.msra.mxu0 0.0
    %540 = vmatprep.subr.mxu0 0.0
    %541 = vmatpush2.msra.mxu0 0.0
    %542 = vmatprep.subr.mxu0 0.0
    %543 = vmatpush2.msra.mxu0 0.0
    %544 = vmatprep.subr.mxu0 0.0
    %545 = vmatpush2.msra.mxu0 0.0
    %546 = vmatprep.subr.mxu0 0.0
    %547 = vmatpush2.msra.mxu0 0.0
    %548 = vmatprep.subr.mxu0 0.0
    %549 = vmatpush2.msra.mxu0 0.0
    %550 = vmatprep.subr.mxu0 0.0
    %551 = vmatpush2.msra.mxu0 0.0
    %552 = vmatprep.subr.mxu0 0.0
    %553 = vmatpush2.msra.mxu0 0.0
    %554 = vmatprep.subr.mxu0 0.0
    %555 = vmatpush2.msra.mxu0 0.0
    %556 = vmatprep.subr.mxu0 0.0
    %557 = vmatpush2.msra.mxu0 0.0
    %558 = vmatprep.subr.mxu0 0.0
    %559 = vmatpush2.msra.mxu0 0.0
    %560 = vmatprep.subr.mxu0 0.0
    %561 = vmatpush2.msra.mxu0 0.0
    %562 = vmatprep.subr.mxu0 0.0
    %563 = vmatpush2.msra.mxu0 0.0
    %564 = vmatprep.mubr.f32.mxu0 0.0
    %565 = vmatmul.mubr.f32.gmra.mxu0 %v498
    %v566 = vpop.f32.mrf.mxu0
    %v567 = vadd.f32 %v495, %v566
    %v568 = vpop.f32.mrf.mxu0
    %569 = vdwg.mxu0
    %v570 = vmin.f32 %v567, 20.0
    %v571 = vmul.f32 %v570, 1.442695
    %v572 = vpow.pop %v571
    %v573 = vadd.f32 %v572, 2.0
    %v574 = vmul.f32 %v572, %v573
    %vm575 = vcmp.gt.f32.partialorder %v567, 20.0
    %v576 = vmul.f32 %v567, %v574
    %v577 = vadd.f32 %v574, 2.0
    %v578 = vrcp.pop %v577
    %v579 = vmul.f32 %v576, %v578
    %v580 = vsel %vm575, %v567, %v579
    %v581 = vld [vmem:[#allocation16] sm:$0x1]
    %v582 = vld [vmem:[#allocation17] sm:$0x1]
    %v583 = vld [vmem:[#allocation19] sm:$0xff]
    %v584 = vld [vmem:[#allocation19 + $0x8] sm:$0xff]
    %v585 = vld [vmem:[#allocation20] sm:$0x1]
    %vm586 = vcmask 130048
    %v587 = vsel %vm586, %v323, 0.0
    %588 = vadd.xlane.f32.xlu0 %v587
    %v589 = vpop.xlane.xlu0 %588
    %v590 = vrcp.pop 16.0
    %v591 = vmul.f32 %v589, %v590
    %v592 = vmul.f32 %v323, %v323
    %v593 = vsel %vm586, %v592, 0.0
    %594 = vadd.xlane.f32.xlu0 %v593
    %v595 = vpop.xlane.xlu0 %594
    %v596 = vmul.f32 %v595, %v590
    %v597 = vmul.f32 %v591, %v591
    %v598 = vsub.f32 %v596, %v597
    %v599 = vmax.f32 %v598, 0.0
    %v600 = vsub.f32 %v323, %v591
    %v601 = vadd.f32 %v599, 1e-05
    %v602 = vrsqrt.pop %v601
    %v603 = vmul.f32 %v600, %v602
    %v605 = vlaneseq
    %v606 = vshrl.u32 %v605, 7
    %v607 = vsub.s32 0, %v606
    %v608 = vrot.slane %v581, %v607
    %v610 = vmul.f32 %v603, %v608
    %v612 = vlaneseq
    %v613 = vshrl.u32 %v612, 7
    %v614 = vsub.s32 0, %v613
    %v615 = vrot.slane %v582, %v614
    %v617 = vadd.f32 %v610, %v615
    %v619 = vlaneseq
    %v620 = vshrl.u32 %v619, 7
    %v621 = vsub.s32 0, %v620
    %v622 = vrot.slane %v585, %v621
    %v625 = vsel %vm586, %v617, 0
    %627 = vmatprep.subr.mxu0 0.0
    %628 = vmatpush1.msra.mxu0 0.0
    %629 = vmatprep.subr.mxu0 0.0
    %630 = vmatpush1.msra.mxu0 0.0
    %631 = vmatprep.subr.mxu0 0.0
    %632 = vmatpush1.msra.mxu0 0.0
    %633 = vmatprep.subr.mxu0 0.0
    %634 = vmatpush1.msra.mxu0 0.0
    %635 = vmatprep.subr.mxu0 0.0
    %636 = vmatpush1.msra.mxu0 0.0
    %637 = vmatprep.subr.mxu0 0.0
    %638 = vmatpush1.msra.mxu0 0.0
    %639 = vmatprep.subr.mxu0 0.0
    %640 = vmatpush1.msra.mxu0 0.0
    %641 = vmatprep.subr.mxu0 0.0
    %642 = vmatpush1.msra.mxu0 0.0
    %643 = vmatprep.subr.mxu0 0.0
    %644 = vmatpush1.msra.mxu0 0.0
    %645 = vmatprep.subr.mxu0 0.0
    %646 = vmatpush1.msra.mxu0 0.0
    %647 = vmatprep.subr.mxu0 0.0
    %648 = vmatpush1.msra.mxu0 0.0
    %649 = vmatprep.subr.mxu0 0.0
    %650 = vmatpush1.msra.mxu0 0.0
    %651 = vmatprep.subr.mxu0 0.0
    %652 = vmatpush1.msra.mxu0 0.0
    %653 = vmatprep.subr.mxu0 0.0
    %654 = vmatpush1.msra.mxu0 0.0
    %655 = vmatprep.subr.mxu0 0.0
    %656 = vmatpush1.msra.mxu0 %v584
    %657 = vmatprep.subr.mxu0 0.0
    %658 = vmatpush1.msra.mxu0 %v583
    %659 = vmatprep.subr.mxu0 0.0
    %660 = vmatpush2.msra.mxu0 0.0
    %661 = vmatprep.subr.mxu0 0.0
    %662 = vmatpush2.msra.mxu0 0.0
    %663 = vmatprep.subr.mxu0 0.0
    %664 = vmatpush2.msra.mxu0 0.0
    %665 = vmatprep.subr.mxu0 0.0
    %666 = vmatpush2.msra.mxu0 0.0
    %667 = vmatprep.subr.mxu0 0.0
    %668 = vmatpush2.msra.mxu0 0.0
    %669 = vmatprep.subr.mxu0 0.0
    %670 = vmatpush2.msra.mxu0 0.0
    %671 = vmatprep.subr.mxu0 0.0
    %672 = vmatpush2.msra.mxu0 0.0
    %673 = vmatprep.subr.mxu0 0.0
    %674 = vmatpush2.msra.mxu0 0.0
    %675 = vmatprep.subr.mxu0 0.0
    %676 = vmatpush2.msra.mxu0 0.0
    %677 = vmatprep.subr.mxu0 0.0
    %678 = vmatpush2.msra.mxu0 0.0
    %679 = vmatprep.subr.mxu0 0.0
    %680 = vmatpush2.msra.mxu0 0.0
    %681 = vmatprep.subr.mxu0 0.0
    %682 = vmatpush2.msra.mxu0 0.0
    %683 = vmatprep.subr.mxu0 0.0
    %684 = vmatpush2.msra.mxu0 0.0
    %685 = vmatprep.subr.mxu0 0.0
    %686 = vmatpush2.msra.mxu0 0.0
    %687 = vmatprep.subr.mxu0 0.0
    %688 = vmatpush2.msra.mxu0 0.0
    %689 = vmatprep.subr.mxu0 0.0
    %690 = vmatpush2.msra.mxu0 0.0
    %691 = vmatprep.mubr.f32.mxu0 0.0
    %692 = vmatmul.mubr.f32.gmra.mxu0 %v625
    %v693 = vpop.f32.mrf.mxu0
    %v694 = vadd.f32 %v622, %v693
    %v695 = vpop.f32.mrf.mxu0
    %696 = vdwg.mxu0
    %v697 = vmin.f32 %v694, 20.0
    %v698 = vmul.f32 %v697, 1.442695
    %v699 = vpow.pop %v698
    %v700 = vadd.f32 %v699, 2.0
    %v701 = vmul.f32 %v699, %v700
    %vm702 = vcmp.gt.f32.partialorder %v694, 20.0
    %v703 = vmul.f32 %v694, %v701
    %v704 = vadd.f32 %v701, 2.0
    %v705 = vrcp.pop %v704
    %v706 = vmul.f32 %v703, %v705
    %v707 = vsel %vm702, %v694, %v706
    %v708 = vld [vmem:[#allocation22] sm:$0x1]
    %v709 = vld [vmem:[#allocation23] sm:$0x1]
    %v710 = vld [vmem:[%s16] sm:$0xff]
    %v711 = vld [vmem:[%s16 + $0x8] sm:$0xff]
    %v712 = vld [vmem:[%s16 + $0x10] sm:$0xff]
    %v713 = vld [vmem:[%s16 + $0x18] sm:$0xff]
    %v714 = vld [vmem:[#allocation25] sm:$0x1]
    %v715 = vsel %vm332, %v707, 0.0
    %716 = vadd.xlane.f32.xlu0 %v715
    %v717 = vpop.xlane.xlu0 %716
    %v718 = vmul.f32 %v717, %v336
    %v719 = vmul.f32 %v707, %v707
    %v720 = vsel %vm332, %v719, 0.0
    %721 = vadd.xlane.f32.xlu0 %v720
    %v722 = vpop.xlane.xlu0 %721
    %v723 = vmul.f32 %v722, %v336
    %v724 = vmul.f32 %v718, %v718
    %v725 = vsub.f32 %v723, %v724
    %v726 = vmax.f32 %v725, 0.0
    %v727 = vsub.f32 %v707, %v718
    %v728 = vadd.f32 %v726, 1e-05
    %v729 = vrsqrt.pop %v728
    %v730 = vmul.f32 %v727, %v729
    %v732 = vlaneseq
    %v733 = vshrl.u32 %v732, 7
    %v734 = vsub.s32 0, %v733
    %v735 = vrot.slane %v708, %v734
    %v737 = vmul.f32 %v730, %v735
    %v739 = vlaneseq
    %v740 = vshrl.u32 %v739, 7
    %v741 = vsub.s32 0, %v740
    %v742 = vrot.slane %v709, %v741
    %v744 = vadd.f32 %v737, %v742
    %v746 = vlaneseq
    %v747 = vshrl.u32 %v746, 7
    %v748 = vsub.s32 0, %v747
    %v749 = vrot.slane %v714, %v748
    %v752 = vsel %vm332, %v744, 0
    %754 = vmatprep.subr.mxu0 0.0
    %755 = vmatpush1.msra.mxu0 0.0
    %756 = vmatprep.subr.mxu0 0.0
    %757 = vmatpush1.msra.mxu0 0.0
    %758 = vmatprep.subr.mxu0 0.0
    %759 = vmatpush1.msra.mxu0 0.0
    %760 = vmatprep.subr.mxu0 0.0
    %761 = vmatpush1.msra.mxu0 0.0
    %762 = vmatprep.subr.mxu0 0.0
    %763 = vmatpush1.msra.mxu0 0.0
    %764 = vmatprep.subr.mxu0 0.0
    %765 = vmatpush1.msra.mxu0 0.0
    %766 = vmatprep.subr.mxu0 0.0
    %767 = vmatpush1.msra.mxu0 0.0
    %768 = vmatprep.subr.mxu0 0.0
    %769 = vmatpush1.msra.mxu0 0.0
    %770 = vmatprep.subr.mxu0 0.0
    %771 = vmatpush1.msra.mxu0 0.0
    %772 = vmatprep.subr.mxu0 0.0
    %773 = vmatpush1.msra.mxu0 0.0
    %774 = vmatprep.subr.mxu0 0.0
    %775 = vmatpush1.msra.mxu0 0.0
    %776 = vmatprep.subr.mxu0 0.0
    %777 = vmatpush1.msra.mxu0 0.0
    %778 = vmatprep.subr.mxu0 0.0
    %779 = vmatpush1.msra.mxu0 %v713
    %780 = vmatprep.subr.mxu0 0.0
    %781 = vmatpush1.msra.mxu0 %v712
    %782 = vmatprep.subr.mxu0 0.0
    %783 = vmatpush1.msra.mxu0 %v711
    %784 = vmatprep.subr.mxu0 0.0
    %785 = vmatpush1.msra.mxu0 %v710
    %786 = vmatprep.subr.mxu0 0.0
    %787 = vmatpush2.msra.mxu0 0.0
    %788 = vmatprep.subr.mxu0 0.0
    %789 = vmatpush2.msra.mxu0 0.0
    %790 = vmatprep.subr.mxu0 0.0
    %791 = vmatpush2.msra.mxu0 0.0
    %792 = vmatprep.subr.mxu0 0.0
    %793 = vmatpush2.msra.mxu0 0.0
    %794 = vmatprep.subr.mxu0 0.0
    %795 = vmatpush2.msra.mxu0 0.0
    %796 = vmatprep.subr.mxu0 0.0
    %797 = vmatpush2.msra.mxu0 0.0
    %798 = vmatprep.subr.mxu0 0.0
    %799 = vmatpush2.msra.mxu0 0.0
    %800 = vmatprep.subr.mxu0 0.0
    %801 = vmatpush2.msra.mxu0 0.0
    %802 = vmatprep.subr.mxu0 0.0
    %803 = vmatpush2.msra.mxu0 0.0
    %804 = vmatprep.subr.mxu0 0.0
    %805 = vmatpush2.msra.mxu0 0.0
    %806 = vmatprep.subr.mxu0 0.0
    %807 = vmatpush2.msra.mxu0 0.0
    %808 = vmatprep.subr.mxu0 0.0
    %809 = vmatpush2.msra.mxu0 0.0
    %810 = vmatprep.subr.mxu0 0.0
    %811 = vmatpush2.msra.mxu0 0.0
    %812 = vmatprep.subr.mxu0 0.0
    %813 = vmatpush2.msra.mxu0 0.0
    %814 = vmatprep.subr.mxu0 0.0
    %815 = vmatpush2.msra.mxu0 0.0
    %816 = vmatprep.subr.mxu0 0.0
    %817 = vmatpush2.msra.mxu0 0.0
    %818 = vmatprep.mubr.f32.mxu0 0.0
    %819 = vmatmul.mubr.f32.gmra.mxu0 %v752
    %v820 = vpop.f32.mrf.mxu0
    %v821 = vadd.f32 %v749, %v820
    %v822 = vpop.f32.mrf.mxu0
    %823 = vdwg.mxu0
    %v824 = vmin.f32 %v821, 20.0
    %v825 = vmul.f32 %v824, 1.442695
    %v826 = vpow.pop %v825
    %v827 = vadd.f32 %v826, 2.0
    %v828 = vmul.f32 %v826, %v827
    %vm829 = vcmp.gt.f32.partialorder %v821, 20.0
    %v830 = vmul.f32 %v821, %v828
    %v831 = vadd.f32 %v828, 2.0
    %v832 = vrcp.pop %v831
    %v833 = vmul.f32 %v830, %v832
    %v834 = vsel %vm829, %v821, %v833
    %v835 = vld [vmem:[%s26] sm:$0xff]
    %v836 = vld [vmem:[%s26 + $0x8] sm:$0xff]
    %v837 = vld [vmem:[%s27] sm:$0xff]
    %v838 = vld [vmem:[%s27 + $0x8] sm:$0xff]
    %v840 = vsel %vm586, %v580, 0
    %842 = vmatprep.subr.mxu0 0.0
    %843 = vmatpush1.msra.mxu0 0.0
    %844 = vmatprep.subr.mxu0 0.0
    %845 = vmatpush1.msra.mxu0 0.0
    %846 = vmatprep.subr.mxu0 0.0
    %847 = vmatpush1.msra.mxu0 0.0
    %848 = vmatprep.subr.mxu0 0.0
    %849 = vmatpush1.msra.mxu0 0.0
    %850 = vmatprep.subr.mxu0 0.0
    %851 = vmatpush1.msra.mxu0 0.0
    %852 = vmatprep.subr.mxu0 0.0
    %853 = vmatpush1.msra.mxu0 0.0
    %854 = vmatprep.subr.mxu0 0.0
    %855 = vmatpush1.msra.mxu0 0.0
    %856 = vmatprep.subr.mxu0 0.0
    %857 = vmatpush1.msra.mxu0 0.0
    %858 = vmatprep.subr.mxu0 0.0
    %859 = vmatpush1.msra.mxu0 0.0
    %860 = vmatprep.subr.mxu0 0.0
    %861 = vmatpush1.msra.mxu0 0.0
    %862 = vmatprep.subr.mxu0 0.0
    %863 = vmatpush1.msra.mxu0 0.0
    %864 = vmatprep.subr.mxu0 0.0
    %865 = vmatpush1.msra.mxu0 0.0
    %866 = vmatprep.subr.mxu0 0.0
    %867 = vmatpush1.msra.mxu0 0.0
    %868 = vmatprep.subr.mxu0 0.0
    %869 = vmatpush1.msra.mxu0 0.0
    %870 = vmatprep.subr.mxu0 0.0
    %871 = vmatpush1.msra.mxu0 %v838
    %872 = vmatprep.subr.mxu0 0.0
    %873 = vmatpush1.msra.mxu0 %v837
    %874 = vmatprep.subr.mxu0 0.0
    %875 = vmatpush2.msra.mxu0 0.0
    %876 = vmatprep.subr.mxu0 0.0
    %877 = vmatpush2.msra.mxu0 0.0
    %878 = vmatprep.subr.mxu0 0.0
    %879 = vmatpush2.msra.mxu0 0.0
    %880 = vmatprep.subr.mxu0 0.0
    %881 = vmatpush2.msra.mxu0 0.0
    %882 = vmatprep.subr.mxu0 0.0
    %883 = vmatpush2.msra.mxu0 0.0
    %884 = vmatprep.subr.mxu0 0.0
    %885 = vmatpush2.msra.mxu0 0.0
    %886 = vmatprep.subr.mxu0 0.0
    %887 = vmatpush2.msra.mxu0 0.0
    %888 = vmatprep.subr.mxu0 0.0
    %889 = vmatpush2.msra.mxu0 0.0
    %890 = vmatprep.subr.mxu0 0.0
    %891 = vmatpush2.msra.mxu0 0.0
    %892 = vmatprep.subr.mxu0 0.0
    %893 = vmatpush2.msra.mxu0 0.0
    %894 = vmatprep.subr.mxu0 0.0
    %895 = vmatpush2.msra.mxu0 0.0
    %896 = vmatprep.subr.mxu0 0.0
    %897 = vmatpush2.msra.mxu0 0.0
    %898 = vmatprep.subr.mxu0 0.0
    %899 = vmatpush2.msra.mxu0 0.0
    %900 = vmatprep.subr.mxu0 0.0
    %901 = vmatpush2.msra.mxu0 0.0
    %902 = vmatprep.subr.mxu0 0.0
    %903 = vmatpush2.msra.mxu0 0.0
    %904 = vmatprep.subr.mxu0 0.0
    %905 = vmatpush2.msra.mxu0 0.0
    %906 = vmatprep.mubr.f32.mxu0 0.0
    %907 = vmatmul.mubr.f32.gmra.mxu0 %v840
    %v908 = vpop.f32.mrf.mxu0
    %v909 = vadd.f32 0.0, %v908
    %v910 = vpop.f32.mrf.mxu0
    %911 = vdwg.mxu0
    %v913 = vsel %vm586, %v834, 0
    %915 = vmatprep.subr.mxu0 0.0
    %916 = vmatpush1.msra.mxu0 0.0
    %917 = vmatprep.subr.mxu0 0.0
    %918 = vmatpush1.msra.mxu0 0.0
    %919 = vmatprep.subr.mxu0 0.0
    %920 = vmatpush1.msra.mxu0 0.0
    %921 = vmatprep.subr.mxu0 0.0
    %922 = vmatpush1.msra.mxu0 0.0
    %923 = vmatprep.subr.mxu0 0.0
    %924 = vmatpush1.msra.mxu0 0.0
    %925 = vmatprep.subr.mxu0 0.0
    %926 = vmatpush1.msra.mxu0 0.0
    %927 = vmatprep.subr.mxu0 0.0
    %928 = vmatpush1.msra.mxu0 0.0
    %929 = vmatprep.subr.mxu0 0.0
    %930 = vmatpush1.msra.mxu0 0.0
    %931 = vmatprep.subr.mxu0 0.0
    %932 = vmatpush1.msra.mxu0 0.0
    %933 = vmatprep.subr.mxu0 0.0
    %934 = vmatpush1.msra.mxu0 0.0
    %935 = vmatprep.subr.mxu0 0.0
    %936 = vmatpush1.msra.mxu0 0.0
    %937 = vmatprep.subr.mxu0 0.0
    %938 = vmatpush1.msra.mxu0 0.0
    %939 = vmatprep.subr.mxu0 0.0
    %940 = vmatpush1.msra.mxu0 0.0
    %941 = vmatprep.subr.mxu0 0.0
    %942 = vmatpush1.msra.mxu0 0.0
    %943 = vmatprep.subr.mxu0 0.0
    %944 = vmatpush1.msra.mxu0 %v836
    %945 = vmatprep.subr.mxu0 0.0
    %946 = vmatpush1.msra.mxu0 %v835
    %947 = vmatprep.subr.mxu0 0.0
    %948 = vmatpush2.msra.mxu0 0.0
    %949 = vmatprep.subr.mxu0 0.0
    %950 = vmatpush2.msra.mxu0 0.0
    %951 = vmatprep.subr.mxu0 0.0
    %952 = vmatpush2.msra.mxu0 0.0
    %953 = vmatprep.subr.mxu0 0.0
    %954 = vmatpush2.msra.mxu0 0.0
    %955 = vmatprep.subr.mxu0 0.0
    %956 = vmatpush2.msra.mxu0 0.0
    %957 = vmatprep.subr.mxu0 0.0
    %958 = vmatpush2.msra.mxu0 0.0
    %959 = vmatprep.subr.mxu0 0.0
    %960 = vmatpush2.msra.mxu0 0.0
    %961 = vmatprep.subr.mxu0 0.0
    %962 = vmatpush2.msra.mxu0 0.0
    %963 = vmatprep.subr.mxu0 0.0
    %964 = vmatpush2.msra.mxu0 0.0
    %965 = vmatprep.subr.mxu0 0.0
    %966 = vmatpush2.msra.mxu0 0.0
    %967 = vmatprep.subr.mxu0 0.0
    %968 = vmatpush2.msra.mxu0 0.0
    %969 = vmatprep.subr.mxu0 0.0
    %970 = vmatpush2.msra.mxu0 0.0
    %971 = vmatprep.subr.mxu0 0.0
    %972 = vmatpush2.msra.mxu0 0.0
    %973 = vmatprep.subr.mxu0 0.0
    %974 = vmatpush2.msra.mxu0 0.0
    %975 = vmatprep.subr.mxu0 0.0
    %976 = vmatpush2.msra.mxu0 0.0
    %977 = vmatprep.subr.mxu0 0.0
    %978 = vmatpush2.msra.mxu0 0.0
    %979 = vmatprep.mubr.f32.mxu0 0.0
    %980 = vmatmul.mubr.f32.gmra.mxu0 %v913
    %v981 = vpop.f32.mrf.mxu0
    %v982 = vadd.f32 %v909, %v981
    %v983 = vpop.f32.mrf.mxu0
    %984 = vdwg.mxu0
    %v985 = vld [vmem:[#allocation26] sm:$0x1]
    %v986 = vld [vmem:[%s19] sm:$0x1]
    %v987 = vld [vmem:[%s20] sm:$0xff]
    %v988 = vld [vmem:[%s20 + $0x8] sm:$0xff]
    %v989 = vld [vmem:[%s20 + $0x10] sm:$0xff]
    %v990 = vld [vmem:[%s20 + $0x18] sm:$0xff]
    %v991 = vld [vmem:[#allocation28] sm:$0x1]
    %v992 = vsel %vm332, %v982, 0.0
    %993 = vadd.xlane.f32.xlu0 %v992
    %v994 = vpop.xlane.xlu0 %993
    %v995 = vmul.f32 %v994, %v336
    %v996 = vmul.f32 %v982, %v982
    %v997 = vsel %vm332, %v996, 0.0
    %998 = vadd.xlane.f32.xlu0 %v997
    %v999 = vpop.xlane.xlu0 %998
    %v1000 = vmul.f32 %v999, %v336
    %v1001 = vmul.f32 %v995, %v995
    %v1002 = vsub.f32 %v1000, %v1001
    %v1003 = vmax.f32 %v1002, 0.0
    %v1004 = vsub.f32 %v982, %v995
    %v1005 = vadd.f32 %v1003, 1e-05
    %v1006 = vrsqrt.pop %v1005
    %v1007 = vmul.f32 %v1004, %v1006
    %v1009 = vlaneseq
    %v1010 = vshrl.u32 %v1009, 7
    %v1011 = vsub.s32 0, %v1010
    %v1012 = vrot.slane %v985, %v1011
    %v1014 = vmul.f32 %v1007, %v1012
    %v1016 = vlaneseq
    %v1017 = vshrl.u32 %v1016, 7
    %v1018 = vsub.s32 0, %v1017
    %v1019 = vrot.slane %v986, %v1018
    %v1021 = vadd.f32 %v1014, %v1019
    %v1023 = vlaneseq
    %v1024 = vshrl.u32 %v1023, 7
    %v1025 = vsub.s32 0, %v1024
    %v1026 = vrot.slane %v991, %v1025
    %v1029 = vsel %vm332, %v1021, 0
    %1031 = vmatprep.subr.mxu0 0.0
    %1032 = vmatpush1.msra.mxu0 0.0
    %1033 = vmatprep.subr.mxu0 0.0
    %1034 = vmatpush1.msra.mxu0 0.0
    %1035 = vmatprep.subr.mxu0 0.0
    %1036 = vmatpush1.msra.mxu0 0.0
    %1037 = vmatprep.subr.mxu0 0.0
    %1038 = vmatpush1.msra.mxu0 0.0
    %1039 = vmatprep.subr.mxu0 0.0
    %1040 = vmatpush1.msra.mxu0 0.0
    %1041 = vmatprep.subr.mxu0 0.0
    %1042 = vmatpush1.msra.mxu0 0.0
    %1043 = vmatprep.subr.mxu0 0.0
    %1044 = vmatpush1.msra.mxu0 0.0
    %1045 = vmatprep.subr.mxu0 0.0
    %1046 = vmatpush1.msra.mxu0 0.0
    %1047 = vmatprep.subr.mxu0 0.0
    %1048 = vmatpush1.msra.mxu0 0.0
    %1049 = vmatprep.subr.mxu0 0.0
    %1050 = vmatpush1.msra.mxu0 0.0
    %1051 = vmatprep.subr.mxu0 0.0
    %1052 = vmatpush1.msra.mxu0 0.0
    %1053 = vmatprep.subr.mxu0 0.0
    %1054 = vmatpush1.msra.mxu0 0.0
    %1055 = vmatprep.subr.mxu0 0.0
    %1056 = vmatpush1.msra.mxu0 %v990
    %1057 = vmatprep.subr.mxu0 0.0
    %1058 = vmatpush1.msra.mxu0 %v989
    %1059 = vmatprep.subr.mxu0 0.0
    %1060 = vmatpush1.msra.mxu0 %v988
    %1061 = vmatprep.subr.mxu0 0.0
    %1062 = vmatpush1.msra.mxu0 %v987
    %1063 = vmatprep.subr.mxu0 0.0
    %1064 = vmatpush2.msra.mxu0 0.0
    %1065 = vmatprep.subr.mxu0 0.0
    %1066 = vmatpush2.msra.mxu0 0.0
    %1067 = vmatprep.subr.mxu0 0.0
    %1068 = vmatpush2.msra.mxu0 0.0
    %1069 = vmatprep.subr.mxu0 0.0
    %1070 = vmatpush2.msra.mxu0 0.0
    %1071 = vmatprep.subr.mxu0 0.0
    %1072 = vmatpush2.msra.mxu0 0.0
    %1073 = vmatprep.subr.mxu0 0.0
    %1074 = vmatpush2.msra.mxu0 0.0
    %1075 = vmatprep.subr.mxu0 0.0
    %1076 = vmatpush2.msra.mxu0 0.0
    %1077 = vmatprep.subr.mxu0 0.0
    %1078 = vmatpush2.msra.mxu0 0.0
    %1079 = vmatprep.subr.mxu0 0.0
    %1080 = vmatpush2.msra.mxu0 0.0
    %1081 = vmatprep.subr.mxu0 0.0
    %1082 = vmatpush2.msra.mxu0 0.0
    %1083 = vmatprep.subr.mxu0 0.0
    %1084 = vmatpush2.msra.mxu0 0.0
    %1085 = vmatprep.subr.mxu0 0.0
    %1086 = vmatpush2.msra.mxu0 0.0
    %1087 = vmatprep.subr.mxu0 0.0
    %1088 = vmatpush2.msra.mxu0 0.0
    %1089 = vmatprep.subr.mxu0 0.0
    %1090 = vmatpush2.msra.mxu0 0.0
    %1091 = vmatprep.subr.mxu0 0.0
    %1092 = vmatpush2.msra.mxu0 0.0
    %1093 = vmatprep.subr.mxu0 0.0
    %1094 = vmatpush2.msra.mxu0 0.0
    %1095 = vmatprep.mubr.f32.mxu0 0.0
    %1096 = vmatmul.mubr.f32.gmra.mxu0 %v1029
    %v1097 = vpop.f32.mrf.mxu0
    %v1098 = vadd.f32 %v1026, %v1097
    %v1099 = vpop.f32.mrf.mxu0
    %1100 = vdwg.mxu0
    %v1101 = vmin.f32 %v1098, 20.0
    %v1102 = vmul.f32 %v1101, 1.442695
    %v1103 = vpow.pop %v1102
    %v1104 = vadd.f32 %v1103, 2.0
    %v1105 = vmul.f32 %v1103, %v1104
    %vm1106 = vcmp.gt.f32.partialorder %v1098, 20.0
    %v1107 = vmul.f32 %v1098, %v1105
    %v1108 = vadd.f32 %v1105, 2.0
    %v1109 = vrcp.pop %v1108
    %v1110 = vmul.f32 %v1107, %v1109
    %v1111 = vsel %vm1106, %v1098, %v1110
    %v1112 = vadd.f32 %v982, %v1111
    %v1113 = vld [vmem:[#allocation29] sm:$0x1]
    %v1114 = vld [vmem:[#allocation31] sm:$0x1]
    %v1115 = vld [vmem:[%s24] sm:$0xff]
    %v1116 = vld [vmem:[%s24 + $0x8] sm:$0xff]
    %v1117 = vld [vmem:[%s24 + $0x10] sm:$0xff]
    %v1118 = vld [vmem:[%s24 + $0x18] sm:$0xff]
    %v1119 = vld [vmem:[#allocation32] sm:$0x1]
    %v1120 = vsel %vm332, %v1112, 0.0
    %1121 = vadd.xlane.f32.xlu0 %v1120
    %v1122 = vpop.xlane.xlu0 %1121
    %v1123 = vmul.f32 %v1122, %v336
    %v1124 = vmul.f32 %v1112, %v1112
    %v1125 = vsel %vm332, %v1124, 0.0
    %1126 = vadd.xlane.f32.xlu0 %v1125
    %v1127 = vpop.xlane.xlu0 %1126
    %v1128 = vmul.f32 %v1127, %v336
    %v1129 = vmul.f32 %v1123, %v1123
    %v1130 = vsub.f32 %v1128, %v1129
    %v1131 = vmax.f32 %v1130, 0.0
    %v1132 = vsub.f32 %v1112, %v1123
    %v1133 = vadd.f32 %v1131, 1e-05
    %v1134 = vrsqrt.pop %v1133
    %v1135 = vmul.f32 %v1132, %v1134
    %v1137 = vlaneseq
    %v1138 = vshrl.u32 %v1137, 7
    %v1139 = vsub.s32 0, %v1138
    %v1140 = vrot.slane %v1113, %v1139
    %v1142 = vmul.f32 %v1135, %v1140
    %v1144 = vlaneseq
    %v1145 = vshrl.u32 %v1144, 7
    %v1146 = vsub.s32 0, %v1145
    %v1147 = vrot.slane %v1114, %v1146
    %v1149 = vadd.f32 %v1142, %v1147
    %v1151 = vlaneseq
    %v1152 = vshrl.u32 %v1151, 7
    %v1153 = vsub.s32 0, %v1152
    %v1154 = vrot.slane %v1119, %v1153
    %v1157 = vsel %vm332, %v1149, 0
    %1159 = vmatprep.subr.mxu0 0.0
    %1160 = vmatpush1.msra.mxu0 0.0
    %1161 = vmatprep.subr.mxu0 0.0
    %1162 = vmatpush1.msra.mxu0 0.0
    %1163 = vmatprep.subr.mxu0 0.0
    %1164 = vmatpush1.msra.mxu0 0.0
    %1165 = vmatprep.subr.mxu0 0.0
    %1166 = vmatpush1.msra.mxu0 0.0
    %1167 = vmatprep.subr.mxu0 0.0
    %1168 = vmatpush1.msra.mxu0 0.0
    %1169 = vmatprep.subr.mxu0 0.0
    %1170 = vmatpush1.msra.mxu0 0.0
    %1171 = vmatprep.subr.mxu0 0.0
    %1172 = vmatpush1.msra.mxu0 0.0
    %1173 = vmatprep.subr.mxu0 0.0
    %1174 = vmatpush1.msra.mxu0 0.0
    %1175 = vmatprep.subr.mxu0 0.0
    %1176 = vmatpush1.msra.mxu0 0.0
    %1177 = vmatprep.subr.mxu0 0.0
    %1178 = vmatpush1.msra.mxu0 0.0
    %1179 = vmatprep.subr.mxu0 0.0
    %1180 = vmatpush1.msra.mxu0 0.0
    %1181 = vmatprep.subr.mxu0 0.0
    %1182 = vmatpush1.msra.mxu0 0.0
    %1183 = vmatprep.subr.mxu0 0.0
    %1184 = vmatpush1.msra.mxu0 %v1118
    %1185 = vmatprep.subr.mxu0 0.0
    %1186 = vmatpush1.msra.mxu0 %v1117
    %1187 = vmatprep.subr.mxu0 0.0
    %1188 = vmatpush1.msra.mxu0 %v1116
    %1189 = vmatprep.subr.mxu0 0.0
    %1190 = vmatpush1.msra.mxu0 %v1115
    %1191 = vmatprep.subr.mxu0 0.0
    %1192 = vmatpush2.msra.mxu0 0.0
    %1193 = vmatprep.subr.mxu0 0.0
    %1194 = vmatpush2.msra.mxu0 0.0
    %1195 = vmatprep.subr.mxu0 0.0
    %1196 = vmatpush2.msra.mxu0 0.0
    %1197 = vmatprep.subr.mxu0 0.0
    %1198 = vmatpush2.msra.mxu0 0.0
    %1199 = vmatprep.subr.mxu0 0.0
    %1200 = vmatpush2.msra.mxu0 0.0
    %1201 = vmatprep.subr.mxu0 0.0
    %1202 = vmatpush2.msra.mxu0 0.0
    %1203 = vmatprep.subr.mxu0 0.0
    %1204 = vmatpush2.msra.mxu0 0.0
    %1205 = vmatprep.subr.mxu0 0.0
    %1206 = vmatpush2.msra.mxu0 0.0
    %1207 = vmatprep.subr.mxu0 0.0
    %1208 = vmatpush2.msra.mxu0 0.0
    %1209 = vmatprep.subr.mxu0 0.0
    %1210 = vmatpush2.msra.mxu0 0.0
    %1211 = vmatprep.subr.mxu0 0.0
    %1212 = vmatpush2.msra.mxu0 0.0
    %1213 = vmatprep.subr.mxu0 0.0
    %1214 = vmatpush2.msra.mxu0 0.0
    %1215 = vmatprep.subr.mxu0 0.0
    %1216 = vmatpush2.msra.mxu0 0.0
    %1217 = vmatprep.subr.mxu0 0.0
    %1218 = vmatpush2.msra.mxu0 0.0
    %1219 = vmatprep.subr.mxu0 0.0
    %1220 = vmatpush2.msra.mxu0 0.0
    %1221 = vmatprep.subr.mxu0 0.0
    %1222 = vmatpush2.msra.mxu0 0.0
    %1223 = vmatprep.mubr.f32.mxu0 0.0
    %1224 = vmatmul.mubr.f32.gmra.mxu0 %v1157
    %v1225 = vpop.f32.mrf.mxu0
    %v1226 = vadd.f32 %v1154, %v1225
    %v1227 = vpop.f32.mrf.mxu0
    %1228 = vdwg.mxu0
    %v1229 = vtanh.pop %v1226
    %1230 = vst [vmem:[#allocation34] sm:$0xff] %v1229
    // Predicated region
    $region194: #{tpu_custom_call.1} parent=1 // pred_check
      _
    $region195: #{tpu_custom_call.1} parent=1 // pred_check_branch
      %1232 = sbr.rel (0) target = $region197
    $region196: #{tpu_custom_call.1} parent=1 // pred_region
      %s1234 = ssub.s32 128, 128
      %1235 = vsyncadd [#allocation4], %s1234
      %s1237 = sshll.u32 [#allocation34], 4
      %s1238 = int_to_ptr.vmem [resolvable:$true] %s1237
      %1240 = dma.vmem_to_hbm [thread:$0]  %s1238, 128, %s28, [#allocation4]
    $region197: #{tpu_custom_call.1} parent=1 // pred_fallthru
      _
    // Predicated region
    $region198: #{tpu_custom_call.1} parent=1 // pred_check
      _
    $region199: #{tpu_custom_call.1} parent=1 // pred_check_branch
      %1242 = sbr.rel (0) target = $region201
    $region200: #{tpu_custom_call.1} parent=1 // pred_region
      %1243 = dma.done [#allocation4], 128
    $region201: #{tpu_custom_call.1} parent=1 // pred_fallthru
      _
    %1244 = vsyncpa [#allocation3], 1
    %1245 = vsyncpa [#allocation6], 1
    %1246 = vsyncpa [#allocation9], 1
    %1247 = vsyncpa [#allocation12], 1
    %1248 = vsyncpa [#allocation15], 1
    %1249 = vsyncpa [#allocation18], 1
    %1250 = vsyncpa [#allocation21], 1
    %1251 = vsyncpa [#allocation24], 1
    %1252 = vsyncpa [#allocation27], 1
    %1253 = vsyncpa [#allocation30], 1
    %1254 = vsyncpa [#allocation33], 1
    %1255 = vsyncpa [#allocation4], 1

</llo_original>
